<compile_context>
chip_gen: v6e
topology: v6e:2x2x1
jax: 0.10.0
libtpu: 0.0.40
codegen_flags: <defaults>
</compile_context>

<pallas_src>
import math

import jax
import jax.numpy as jnp
from jax.experimental import pallas as pl
from jax.experimental.pallas import tpu as pltpu

N = 256        # num_nodes
C = 32         # in_channels
T = 4          # time_length (number of graph snapshots)
RRELU_SLOPE = (1.0 / 8.0 + 1.0 / 3.0) / 2.0   # nn.RReLU() eval-mode slope


# ---------------------------------------------------------------------------
# Kernel 1: pool layer  X_tilde = X @ pool_W^T   (called once, hoisted)
# ---------------------------------------------------------------------------
def pool_kernel(x_ref, w_ref, o_ref):
    o_ref[...] = jnp.dot(x_ref[...], w_ref[...], preferred_element_type=jnp.float32)


def pool_pallas(x, w_t):
    n, f = x.shape
    c = w_t.shape[1]
    return pl.pallas_call(
        pool_kernel,
        out_shape=jax.ShapeDtypeStruct((n, c), jnp.float32),
        in_specs=[
            pl.BlockSpec((n, f), lambda: (0, 0)),
            pl.BlockSpec((f, c), lambda: (0, 0)),
        ],
        out_specs=pl.BlockSpec((n, c), lambda: (0, 0)),
    )(x, w_t)


# ---------------------------------------------------------------------------
# Kernel 2: fused per-timestep kernel, grid=(T,)
#   - mat_GRU cell evolving W (carried in VMEM scratch across grid steps)
#   - GCN propagation: rrelu(A_norm[t] @ (X_tilde @ W_new))
# ---------------------------------------------------------------------------
def fused_kernel(z_ref, w0_ref, wzrh_ref, uzr_ref, uh_ref, b3_ref,
                 xt_ref, a_ref, o_ref, w_scr):
    c = w0_ref.shape[0]

    @pl.when(pl.program_id(0) == 0)
    def _():
        w_scr[...] = w0_ref[...]

    # ---- mat_GRU cell (batched gate matmuls) ----
    z = z_ref[...]                       # (C, C)
    h = w_scr[...]                       # prev W, (C, C)
    wz_all = jnp.dot(wzrh_ref[...], z, preferred_element_type=jnp.float32) + b3_ref[...]   # (3C, C)
    uh_all = jnp.dot(uzr_ref[...], h, preferred_element_type=jnp.float32)                  # (2C, C)
    update = jax.nn.sigmoid(wz_all[0:c] + uh_all[0:c])
    reset = jax.nn.sigmoid(wz_all[c:2 * c] + uh_all[c:2 * c])
    h_cap = reset * h
    h_cap = jnp.tanh(wz_all[2 * c:3 * c]
                     + jnp.dot(uh_ref[...], h_cap, preferred_element_type=jnp.float32))
    w_new = (1.0 - update) * h + update * h_cap
    w_scr[...] = w_new

    # ---- GCN propagation fused with RReLU (eval-mode slope) ----
    xw = jnp.dot(xt_ref[...], w_new.astype(jnp.bfloat16),
                 preferred_element_type=jnp.float32)                # (N, C) f32
    y = jnp.dot(a_ref[0], xw.astype(jnp.bfloat16),
                preferred_element_type=jnp.float32)                 # (N, C) f32
    o_ref[0] = jnp.where(y >= 0.0, y, y * jnp.float32(RRELU_SLOPE))


def fused_pallas(z_topk, w0, wzrh, uzr, uh, b3, x_tilde_bf16, a_norms_bf16):
    t_len, n, _ = a_norms_bf16.shape
    c = w0.shape[0]

    def const2d(shape):
        return pl.BlockSpec(shape, lambda t: (0, 0))

    return pl.pallas_call(
        fused_kernel,
        out_shape=jax.ShapeDtypeStruct((t_len, n, c), jnp.float32),
        grid=(t_len,),
        in_specs=[
            const2d((c, c)),                                   # z_topk
            const2d((c, c)),                                   # initial W
            const2d((3 * c, c)),                               # [Wz;Wr;Wh]
            const2d((2 * c, c)),                               # [Uz;Ur]
            const2d((c, c)),                                   # Uh
            const2d((3 * c, c)),                               # [bz;br;bh]
            const2d((n, c)),                                   # X_tilde (bf16)
            pl.BlockSpec((1, n, n), lambda t: (t, 0, 0)),      # A_norm[t] (bf16)
        ],
        out_specs=pl.BlockSpec((1, n, c), lambda t: (t, 0, 0)),
        scratch_shapes=[pltpu.VMEM((c, c), jnp.float32)],      # W carried across t
        # t axis is a sequential recurrence (W carry) -> arbitrary.
        # (On v7x one could additionally add a parallel node-tile axis for the
        #  2 TensorCores; total compute here is so small it is not worth it.)
        compiler_params=pltpu.CompilerParams(dimension_semantics=("arbitrary",)),
    )(z_topk, w0, wzrh, uzr, uh, b3, x_tilde_bf16, a_norms_bf16)


# ---------------------------------------------------------------------------
# Glue: TopK node selection (data-dependent gather -> plain JAX)
# ---------------------------------------------------------------------------
def choose_topk(node_embs, scorer, k):
    # scores = (Z @ scorer) / ||scorer||, select top-k rows, scale by tanh(score)
    # NOTE: jax.lax.top_k tie-breaking may differ from torch.topk on exact ties.
    scores = (node_embs @ scorer) / jnp.linalg.norm(scorer)       # (N, 1)
    vals, idx = jax.lax.top_k(scores[:, 0], k)                    # (k,), (k,)
    gathered = node_embs[idx]                                     # (k, C)
    out = gathered * jnp.tanh(vals)[:, None]                      # (k, C)
    return out.T                                                  # (C, k)


# ---------------------------------------------------------------------------
# Glue: dense symmetric-normalized adjacency (A + I, D^-1/2 A_hat D^-1/2)
# ---------------------------------------------------------------------------
def normalized_adjacency(src, dst, n):
    a = jnp.zeros((n, n), jnp.float32).at[src, dst].set(1.0)
    a = jnp.maximum(a, a.T)                                       # to_undirected
    a = a * (1.0 - jnp.eye(n, dtype=jnp.float32))                 # drop incidental self loops
    a_hat = a + jnp.eye(n, dtype=jnp.float32)                     # add self loops
    deg = a_hat.sum(axis=1)
    dinv = jnp.where(deg > 0, 1.0 / jnp.sqrt(deg), 0.0)
    return dinv[:, None] * a_hat * dinv[None, :]


# ---------------------------------------------------------------------------
# Full EvolveGCN-H forward over a sequence of snapshots
# ---------------------------------------------------------------------------
def evolve_gcn_h_forward(x_onehot, a_norms, params):
    # Loop-invariant work hoisted: X is the same static one-hot matrix for
    # every snapshot, so X_tilde and the TopK selection are computed once.
    x_tilde = pool_pallas(x_onehot, params["pool_Wt"])            # (N, C)
    z_topk = choose_topk(x_tilde, params["scorer"], C)            # (C, C)

    # Batch the GRU gate parameters so the kernel issues 3 MXU pushes, not 6,
    # and all gate weights are DMA'd once and stay VMEM-resident across T.
    wzrh = jnp.concatenate([params["Wz"], params["Wr"], params["Wh"]], axis=0)  # (3C, C)
    uzr = jnp.concatenate([params["Uz"], params["Ur"]], axis=0)                 # (2C, C)
    b3 = jnp.concatenate([params["bz"], params["br"], params["bh"]], axis=0)    # (3C, C)

    out_tnc = fused_pallas(
        z_topk, params["initial_weight"], wzrh, uzr, params["Uh"], b3,
        x_tilde.astype(jnp.bfloat16), a_norms.astype(jnp.bfloat16))             # (T, N, C)
    return jnp.transpose(out_tnc, (1, 0, 2))                                    # (N, T, C)


# ---------------------------------------------------------------------------
# Deterministic parameter init (mirrors module __init__ shapes)
# ---------------------------------------------------------------------------
def init_params(key):
    ks = jax.random.split(key, 10)

    def unif(k, shape, stdv):
        return jax.random.uniform(k, shape, jnp.float32, -stdv, stdv)

    stdv_c = 1.0 / math.sqrt(C)
    stdv_n = 1.0 / math.sqrt(N)
    return {
        "initial_weight": unif(ks[0], (C, C), stdv_c),
        # torch Linear(num_nodes, in_channels, bias=False) weight is (C, N);
        # we store its transpose (N, C) so the kernel does X @ W^T directly.
        "pool_Wt": unif(ks[1], (N, C), stdv_n),
        "scorer": unif(ks[2], (C, 1), stdv_c),
        "Wz": unif(ks[3], (C, C), stdv_c), "Uz": unif(ks[4], (C, C), stdv_c),
        "bz": jnp.zeros((C, C), jnp.float32),
        "Wr": unif(ks[5], (C, C), stdv_c), "Ur": unif(ks[6], (C, C), stdv_c),
        "br": jnp.zeros((C, C), jnp.float32),
        "Wh": unif(ks[7], (C, C), stdv_c), "Uh": unif(ks[8], (C, C), stdv_c),
        "bh": jnp.zeros((C, C), jnp.float32),
    }


if __name__ == "__main__":
    key = jax.random.PRNGKey(0)
    pkey, gkey = jax.random.split(key)
    params = init_params(pkey)

    # one-hot node features (num_nodes x num_nodes identity), as in one_hot=True
    x_onehot = jnp.eye(N, dtype=jnp.float32)

    # deterministic synthetic dynamic graph: T snapshots of random edges
    E = 512
    a_norms = []
    for t in range(T):
        ek = jax.random.fold_in(gkey, t)
        k1, k2 = jax.random.split(ek)
        src = jax.random.randint(k1, (E,), 0, N)
        dst = jax.random.randint(k2, (E,), 0, N)
        a_norms.append(normalized_adjacency(src, dst, N))
    a_norms = jnp.stack(a_norms, axis=0)                          # (T, N, N)

    fwd = jax.jit(evolve_gcn_h_forward)
    final_emb = fwd(x_onehot, a_norms, params)
    final_emb = jax.block_until_ready(final_emb)

    assert final_emb.shape == (N, T, C), final_emb.shape
    assert bool(jnp.all(jnp.isfinite(final_emb)))
    print("KERNEL_OK")
</pallas_src>

<mosaic_0001>
module attributes {stable_mosaic.version = 11 : i64} {
  func.func @pool_kernel(%arg0: memref<256x256xf32, #tpu.memory_space<vmem>>, %arg1: memref<256x32xf32, #tpu.memory_space<vmem>>, %arg2: memref<256x32xf32, #tpu.memory_space<vmem>>) attributes {dimension_semantics = [], scalar_prefetch = 0 : i64, scratch_operands = 0 : i64, tpu.core_type = #tpu.core_type<tc>} {
    %c0 = arith.constant 0 : index
    %c0_0 = arith.constant 0 : index
    %0 = vector.load %arg0[%c0, %c0_0] : memref<256x256xf32, #tpu.memory_space<vmem>>, vector<256x256xf32>
    %c0_1 = arith.constant 0 : index
    %c0_2 = arith.constant 0 : index
    %1 = vector.load %arg1[%c0_1, %c0_2] : memref<256x32xf32, #tpu.memory_space<vmem>>, vector<256x32xf32>
    %cst = arith.constant dense<0.000000e+00> : vector<256x32xf32>
    %2 = tpu.matmul %0, %1, %cst {dimension_numbers = #tpu.dot_dimension_numbers<[1], [0], [0], [1], [0, 0, 1, 1], [], []>} : vector<256x256xf32>, vector<256x32xf32>, vector<256x32xf32> -> vector<256x32xf32>
    %c0_3 = arith.constant 0 : index
    %c0_4 = arith.constant 0 : index
    %3 = vector.load %arg2[%c0_3, %c0_4] : memref<256x32xf32, #tpu.memory_space<vmem>>, vector<256x32xf32>
    tpu.vector_store %arg2[%c0_3, %c0_4], %2 {strides = array<i32>} : memref<256x32xf32, #tpu.memory_space<vmem>>, vector<256x32xf32>,
    return
  }
}

module attributes {stable_mosaic.version = 11 : i64} {
  func.func @fused_kernel(%arg0: i32, %arg1: memref<32x32xf32, #tpu.memory_space<vmem>>, %arg2: memref<32x32xf32, #tpu.memory_space<vmem>>, %arg3: memref<96x32xf32, #tpu.memory_space<vmem>>, %arg4: memref<64x32xf32, #tpu.memory_space<vmem>>, %arg5: memref<32x32xf32, #tpu.memory_space<vmem>>, %arg6: memref<96x32xf32, #tpu.memory_space<vmem>>, %arg7: memref<256x32xbf16, #tpu.memory_space<vmem>>, %arg8: memref<1x256x256xbf16, #tpu.memory_space<vmem>>, %arg9: memref<1x256x32xf32, #tpu.memory_space<vmem>>, %arg10: memref<32x32xf32, #tpu.memory_space<vmem>>) attributes {dimension_semantics = [#tpu.dimension_semantics<arbitrary>], iteration_bounds = array<i64: 4>, scalar_prefetch = 0 : i64, scratch_operands = 1 : i64, tpu.core_type = #tpu.core_type<tc>, window_params = [{pipeline_mode = #tpu.pipeline_mode<synchronous>, transform_indices = @transform_0, window_bounds = array<i64: 32, 32>}, {pipeline_mode = #tpu.pipeline_mode<synchronous>, transform_indices = @transform_1, window_bounds = array<i64: 32, 32>}, {pipeline_mode = #tpu.pipeline_mode<synchronous>, transform_indices = @transform_2, window_bounds = array<i64: 96, 32>}, {pipeline_mode = #tpu.pipeline_mode<synchronous>, transform_indices = @transform_3, window_bounds = array<i64: 64, 32>}, {pipeline_mode = #tpu.pipeline_mode<synchronous>, transform_indices = @transform_4, window_bounds = array<i64: 32, 32>}, {pipeline_mode = #tpu.pipeline_mode<synchronous>, transform_indices = @transform_5, window_bounds = array<i64: 96, 32>}, {pipeline_mode = #tpu.pipeline_mode<synchronous>, transform_indices = @transform_6, window_bounds = array<i64: 256, 32>}, {transform_indices = @transform_7, window_bounds = array<i64: 1, 256, 256>}, {transform_indices = @transform_8, window_bounds = array<i64: 1, 256, 32>}]} {
    %c0_i32 = arith.constant 0 : i32
    %0 = arith.cmpi eq, %arg0, %c0_i32 : i32
    %1 = arith.extui %0 : i1 to i32
    %c0_i32_0 = arith.constant 0 : i32
    %2 = arith.cmpi ne, %1, %c0_i32_0 : i32
    scf.if %2 {
      %c0_31 = arith.constant 0 : index
      %c0_32 = arith.constant 0 : index
      %54 = vector.load %arg2[%c0_31, %c0_32] : memref<32x32xf32, #tpu.memory_space<vmem>>, vector<32x32xf32>
      %c0_33 = arith.constant 0 : index
      %c0_34 = arith.constant 0 : index
      %55 = vector.load %arg10[%c0_33, %c0_34] : memref<32x32xf32, #tpu.memory_space<vmem>>, vector<32x32xf32>
      tpu.vector_store %arg10[%c0_33, %c0_34], %54 {strides = array<i32>} : memref<32x32xf32, #tpu.memory_space<vmem>>, vector<32x32xf32>,
    } else {
    }
    %c0 = arith.constant 0 : index
    %c0_1 = arith.constant 0 : index
    %3 = vector.load %arg1[%c0, %c0_1] : memref<32x32xf32, #tpu.memory_space<vmem>>, vector<32x32xf32>
    %c0_2 = arith.constant 0 : index
    %c0_3 = arith.constant 0 : index
    %4 = vector.load %arg10[%c0_2, %c0_3] : memref<32x32xf32, #tpu.memory_space<vmem>>, vector<32x32xf32>
    %c0_4 = arith.constant 0 : index
    %c0_5 = arith.constant 0 : index
    %5 = vector.load %arg3[%c0_4, %c0_5] : memref<96x32xf32, #tpu.memory_space<vmem>>, vector<96x32xf32>
    %cst = arith.constant dense<0.000000e+00> : vector<96x32xf32>
    %6 = tpu.matmul %5, %3, %cst {dimension_numbers = #tpu.dot_dimension_numbers<[1], [0], [0], [1], [0, 0, 1, 1], [], []>} : vector<96x32xf32>, vector<32x32xf32>, vector<96x32xf32> -> vector<96x32xf32>
    %c0_6 = arith.constant 0 : index
    %c0_7 = arith.constant 0 : index
    %7 = vector.load %arg6[%c0_6, %c0_7] : memref<96x32xf32, #tpu.memory_space<vmem>>, vector<96x32xf32>
    %8 = arith.addf %6, %7 : vector<96x32xf32>
    %c0_8 = arith.constant 0 : index
    %c0_9 = arith.constant 0 : index
    %9 = vector.load %arg4[%c0_8, %c0_9] : memref<64x32xf32, #tpu.memory_space<vmem>>, vector<64x32xf32>
    %cst_10 = arith.constant dense<0.000000e+00> : vector<64x32xf32>
    %10 = tpu.matmul %9, %4, %cst_10 {dimension_numbers = #tpu.dot_dimension_numbers<[1], [0], [0], [1], [0, 0, 1, 1], [], []>} : vector<64x32xf32>, vector<32x32xf32>, vector<64x32xf32> -> vector<64x32xf32>
    %11 = vector.extract_strided_slice %8 {offsets = [0, 0], sizes = [32, 32], strides = [1, 1]} : vector<96x32xf32> to vector<32x32xf32>
    %12 = vector.extract_strided_slice %10 {offsets = [0, 0], sizes = [32, 32], strides = [1, 1]} : vector<64x32xf32> to vector<32x32xf32>
    %13 = arith.addf %11, %12 : vector<32x32xf32>
    %14 = arith.negf %13 : vector<32x32xf32>
    %15 = math.exp %14 : vector<32x32xf32>
    %cst_11 = arith.constant 1.000000e+00 : f32
    %16 = vector.broadcast %cst_11 : f32 to vector<32x32xf32>
    %17 = arith.addf %16, %15 : vector<32x32xf32>
    %18 = arith.divf %16, %17 : vector<32x32xf32>
    %19 = vector.extract_strided_slice %8 {offsets = [32, 0], sizes = [32, 32], strides = [1, 1]} : vector<96x32xf32> to vector<32x32xf32>
    %20 = vector.extract_strided_slice %10 {offsets = [32, 0], sizes = [32, 32], strides = [1, 1]} : vector<64x32xf32> to vector<32x32xf32>
    %21 = arith.addf %19, %20 : vector<32x32xf32>
    %22 = arith.negf %21 : vector<32x32xf32>
    %23 = math.exp %22 : vector<32x32xf32>
    %cst_12 = arith.constant 1.000000e+00 : f32
    %24 = vector.broadcast %cst_12 : f32 to vector<32x32xf32>
    %25 = arith.addf %24, %23 : vector<32x32xf32>
    %26 = arith.divf %24, %25 : vector<32x32xf32>
    %27 = arith.mulf %26, %4 : vector<32x32xf32>
    %28 = vector.extract_strided_slice %8 {offsets = [64, 0], sizes = [32, 32], strides = [1, 1]} : vector<96x32xf32> to vector<32x32xf32>
    %c0_13 = arith.constant 0 : index
    %c0_14 = arith.constant 0 : index
    %29 = vector.load %arg5[%c0_13, %c0_14] : memref<32x32xf32, #tpu.memory_space<vmem>>, vector<32x32xf32>
    %cst_15 = arith.constant dense<0.000000e+00> : vector<32x32xf32>
    %30 = tpu.matmul %29, %27, %cst_15 {dimension_numbers = #tpu.dot_dimension_numbers<[1], [0], [0], [1], [0, 0, 1, 1], [], []>} : vector<32x32xf32>, vector<32x32xf32>, vector<32x32xf32> -> vector<32x32xf32>
    %31 = arith.addf %28, %30 : vector<32x32xf32>
    %32 = math.tanh %31 : vector<32x32xf32>
    %cst_16 = arith.constant 1.000000e+00 : f32
    %33 = vector.broadcast %cst_16 : f32 to vector<32x32xf32>
    %34 = arith.subf %33, %18 : vector<32x32xf32>
    %35 = arith.mulf %34, %4 : vector<32x32xf32>
    %36 = arith.mulf %18, %32 : vector<32x32xf32>
    %37 = arith.addf %35, %36 : vector<32x32xf32>
    %c0_17 = arith.constant 0 : index
    %c0_18 = arith.constant 0 : index
    %38 = vector.load %arg10[%c0_17, %c0_18] : memref<32x32xf32, #tpu.memory_space<vmem>>, vector<32x32xf32>
    tpu.vector_store %arg10[%c0_17, %c0_18], %37 {strides = array<i32>} : memref<32x32xf32, #tpu.memory_space<vmem>>, vector<32x32xf32>,
    %c0_19 = arith.constant 0 : index
    %c0_20 = arith.constant 0 : index
    %39 = vector.load %arg7[%c0_19, %c0_20] : memref<256x32xbf16, #tpu.memory_space<vmem>>, vector<256x32xbf16>
    %40 = arith.truncf %37 : vector<32x32xf32> to vector<32x32xbf16>
    %cst_21 = arith.constant dense<0.000000e+00> : vector<256x32xf32>
    %41 = tpu.matmul %39, %40, %cst_21 {dimension_numbers = #tpu.dot_dimension_numbers<[1], [0], [0], [1], [0, 0, 1, 1], [], []>} : vector<256x32xbf16>, vector<32x32xbf16>, vector<256x32xf32> -> vector<256x32xf32>
    %c0_22 = arith.constant 0 : index
    %c0_23 = arith.constant 0 : index
    %c0_24 = arith.constant 0 : index
    %42 = vector.load %arg8[%c0_22, %c0_23, %c0_24] : memref<1x256x256xbf16, #tpu.memory_space<vmem>>, vector<1x256x256xbf16>
    %43 = vector.shape_cast %42 : vector<1x256x256xbf16> to vector<256x256xbf16>
    %44 = arith.truncf %41 : vector<256x32xf32> to vector<256x32xbf16>
    %cst_25 = arith.constant dense<0.000000e+00> : vector<256x32xf32>
    %45 = tpu.matmul %43, %44, %cst_25 {dimension_numbers = #tpu.dot_dimension_numbers<[1], [0], [0], [1], [0, 0, 1, 1], [], []>} : vector<256x256xbf16>, vector<256x32xbf16>, vector<256x32xf32> -> vector<256x32xf32>
    %cst_26 = arith.constant 0.000000e+00 : f32
    %46 = vector.broadcast %cst_26 : f32 to vector<256x32xf32>
    %47 = arith.cmpf oge, %45, %46 : vector<256x32xf32>
    %cst_27 = arith.constant 0.229166672 : f32
    %48 = vector.broadcast %cst_27 : f32 to vector<256x32xf32>
    %49 = arith.mulf %45, %48 : vector<256x32xf32>
    %50 = arith.select %47, %45, %49 : vector<256x32xi1>, vector<256x32xf32>
    %c0_28 = arith.constant 0 : index
    %c0_29 = arith.constant 0 : index
    %c0_30 = arith.constant 0 : index
    %51 = vector.load %arg9[%c0_28, %c0_29, %c0_30] : memref<1x256x32xf32, #tpu.memory_space<vmem>>, vector<1x256x32xf32>
    %52 = vector.shape_cast %51 : vector<1x256x32xf32> to vector<256x32xf32>
    %53 = vector.shape_cast %50 : vector<256x32xf32> to vector<1x256x32xf32>
    tpu.vector_store %arg9[%c0_28, %c0_29, %c0_30], %53 {strides = array<i32>} : memref<1x256x32xf32, #tpu.memory_space<vmem>>, vector<1x256x32xf32>,
    return
  }
  func.func @transform_0(%arg0: i32) -> (i32, i32) {
    %c0_i32 = arith.constant 0 : i32
    %c0_i32_0 = arith.constant 0 : i32
    %c0_i32_1 = arith.constant 0 : i32
    return %c0_i32, %c0_i32_0 : i32, i32
  }
  func.func @transform_1(%arg0: i32) -> (i32, i32) {
    %c0_i32 = arith.constant 0 : i32
    %c0_i32_0 = arith.constant 0 : i32
    %c0_i32_1 = arith.constant 0 : i32
    return %c0_i32, %c0_i32_0 : i32, i32
  }
  func.func @transform_2(%arg0: i32) -> (i32, i32) {
    %c0_i32 = arith.constant 0 : i32
    %c0_i32_0 = arith.constant 0 : i32
    %c0_i32_1 = arith.constant 0 : i32
    return %c0_i32, %c0_i32_0 : i32, i32
  }
  func.func @transform_3(%arg0: i32) -> (i32, i32) {
    %c0_i32 = arith.constant 0 : i32
    %c0_i32_0 = arith.constant 0 : i32
    %c0_i32_1 = arith.constant 0 : i32
    return %c0_i32, %c0_i32_0 : i32, i32
  }
  func.func @transform_4(%arg0: i32) -> (i32, i32) {
    %c0_i32 = arith.constant 0 : i32
    %c0_i32_0 = arith.constant 0 : i32
    %c0_i32_1 = arith.constant 0 : i32
    return %c0_i32, %c0_i32_0 : i32, i32
  }
  func.func @transform_5(%arg0: i32) -> (i32, i32) {
    %c0_i32 = arith.constant 0 : i32
    %c0_i32_0 = arith.constant 0 : i32
    %c0_i32_1 = arith.constant 0 : i32
    return %c0_i32, %c0_i32_0 : i32, i32
  }
  func.func @transform_6(%arg0: i32) -> (i32, i32) {
    %c0_i32 = arith.constant 0 : i32
    %c0_i32_0 = arith.constant 0 : i32
    %c0_i32_1 = arith.constant 0 : i32
    return %c0_i32, %c0_i32_0 : i32, i32
  }
  func.func @transform_7(%arg0: i32) -> (i32, i32, i32) {
    %c0_i32 = arith.constant 0 : i32
    %c0_i32_0 = arith.constant 0 : i32
    %c0_i32_1 = arith.constant 0 : i32
    return %arg0, %c0_i32, %c0_i32_0 : i32, i32, i32
  }
  func.func @transform_8(%arg0: i32) -> (i32, i32, i32) {
    %c0_i32 = arith.constant 0 : i32
    %c0_i32_0 = arith.constant 0 : i32
    %c0_i32_1 = arith.constant 0 : i32
    return %arg0, %c0_i32, %c0_i32_0 : i32, i32, i32
  }
}

</mosaic_0001>

<llo_original>
// kernel: evolve_gcn_h_forward.2
$region0: #{evolve_gcn_h_forward.2}
  #allocation0 [shape = 'u32[]', space=smem, size = 0x4, offset = 0x4, fixed_abs, tag = 'smem constant byte address 0x4 - core index']
  #allocation1 [shape = 'u32[144,128]{1,0:T(1,128)}', space=vmem, size = 0x12000, scoped, tag = 'internal scratch']
  %s0 = inlined_call_operand.hbm [shape: f32[256,256], index: 0, kind: input, shape index: {}]
  %s1 = inlined_call_operand.vmem [shape: f32[256,32], index: 1, kind: input, shape index: {}]
  %s2 = inlined_call_operand.vmem [shape: f32[256,32], index: 2, kind: output, shape index: {}]
  %s3 = sld [smem:[#allocation0]]
  $region22: #{evolve_gcn_h_forward.2} parent=0
    _
  %s5 = ssub.s32 1, %s3
  %s6 = scalar_select 0, %s5, %s3
  $region1: #{evolve_gcn_h_forward.2} parent=0
    #allocation2 [shape = 'u8[262144]{0}', space=vmem, size = 0x40000, scoped, tag = 'input window, operand 0, single buffered']
    #allocation3 [shape = 's32[1]{0}', space=sflag, size = 0x4, scoped, tag = 'scoped memory for evolve_gcn_h_forward.2']
    %7 = vsyncpa [#allocation3], 0
    // Predicated region
    $region2: #{evolve_gcn_h_forward.2} parent=1 // pred_check
      _
    $region3: #{evolve_gcn_h_forward.2} parent=1 // pred_check_branch
      %9 = sbr.rel (0) target = $region5
    $region4: #{evolve_gcn_h_forward.2} parent=1 // pred_region
      %s11 = ssub.s32 8192, 8192
      %12 = vsyncadd [#allocation3], %s11
      %s13 = sshll.u32 [#allocation2], 4
      %s14 = int_to_ptr.vmem [resolvable:$true] %s13
      %19 = dma.hbm_to_vmem [thread:$0]  %s0, 8192, %s14, [#allocation3], 256, 256, 16
    $region5: #{evolve_gcn_h_forward.2} parent=1 // pred_fallthru
      _
    // Predicated region
    $region6: #{evolve_gcn_h_forward.2} parent=1 // pred_check
      _
    $region7: #{evolve_gcn_h_forward.2} parent=1 // pred_check_branch
      %21 = sbr.rel (0) target = $region9
    $region8: #{evolve_gcn_h_forward.2} parent=1 // pred_region
      _
    $region9: #{evolve_gcn_h_forward.2} parent=1 // pred_fallthru
      _
    // Predicated region
    $region10: #{evolve_gcn_h_forward.2} parent=1 // pred_check
      _
    $region11: #{evolve_gcn_h_forward.2} parent=1 // pred_check_branch
      %23 = sbr.rel (0) target = $region13
    $region12: #{evolve_gcn_h_forward.2} parent=1 // pred_region
      %24 = dma.done [#allocation3], 8192
    $region13: #{evolve_gcn_h_forward.2} parent=1 // pred_fallthru
      _
    %v25 = vld [vmem:[#allocation2] sm:$0xff]
    %v26 = vld [vmem:[#allocation2 + $0x8] sm:$0xff]
    %v27 = vld [vmem:[#allocation2 + $0x10] sm:$0xff]
    %v28 = vld [vmem:[#allocation2 + $0x18] sm:$0xff]
    %v29 = vld [vmem:[#allocation2 + $0x20] sm:$0xff]
    %v30 = vld [vmem:[#allocation2 + $0x28] sm:$0xff]
    %v31 = vld [vmem:[#allocation2 + $0x30] sm:$0xff]
    %v32 = vld [vmem:[#allocation2 + $0x38] sm:$0xff]
    %v33 = vld [vmem:[#allocation2 + $0x40] sm:$0xff]
    %v34 = vld [vmem:[#allocation2 + $0x48] sm:$0xff]
    %v35 = vld [vmem:[#allocation2 + $0x50] sm:$0xff]
    %v36 = vld [vmem:[#allocation2 + $0x58] sm:$0xff]
    %v37 = vld [vmem:[#allocation2 + $0x60] sm:$0xff]
    %v38 = vld [vmem:[#allocation2 + $0x68] sm:$0xff]
    %v39 = vld [vmem:[#allocation2 + $0x70] sm:$0xff]
    %v40 = vld [vmem:[#allocation2 + $0x78] sm:$0xff]
    %v41 = vld [vmem:[#allocation2 + $0x80] sm:$0xff]
    %v42 = vld [vmem:[#allocation2 + $0x88] sm:$0xff]
    %v43 = vld [vmem:[#allocation2 + $0x90] sm:$0xff]
    %v44 = vld [vmem:[#allocation2 + $0x98] sm:$0xff]
    %v45 = vld [vmem:[#allocation2 + $0xa0] sm:$0xff]
    %v46 = vld [vmem:[#allocation2 + $0xa8] sm:$0xff]
    %v47 = vld [vmem:[#allocation2 + $0xb0] sm:$0xff]
    %v48 = vld [vmem:[#allocation2 + $0xb8] sm:$0xff]
    %v49 = vld [vmem:[#allocation2 + $0xc0] sm:$0xff]
    %v50 = vld [vmem:[#allocation2 + $0xc8] sm:$0xff]
    %v51 = vld [vmem:[#allocation2 + $0xd0] sm:$0xff]
    %v52 = vld [vmem:[#allocation2 + $0xd8] sm:$0xff]
    %v53 = vld [vmem:[#allocation2 + $0xe0] sm:$0xff]
    %v54 = vld [vmem:[#allocation2 + $0xe8] sm:$0xff]
    %v55 = vld [vmem:[#allocation2 + $0xf0] sm:$0xff]
    %v56 = vld [vmem:[#allocation2 + $0xf8] sm:$0xff]
    %v57 = vld [vmem:[#allocation2 + $0x100] sm:$0xff]
    %v58 = vld [vmem:[#allocation2 + $0x108] sm:$0xff]
    %v59 = vld [vmem:[#allocation2 + $0x110] sm:$0xff]
    %v60 = vld [vmem:[#allocation2 + $0x118] sm:$0xff]
    %v61 = vld [vmem:[#allocation2 + $0x120] sm:$0xff]
    %v62 = vld [vmem:[#allocation2 + $0x128] sm:$0xff]
    %v63 = vld [vmem:[#allocation2 + $0x130] sm:$0xff]
    %v64 = vld [vmem:[#allocation2 + $0x138] sm:$0xff]
    %v65 = vld [vmem:[#allocation2 + $0x140] sm:$0xff]
    %v66 = vld [vmem:[#allocation2 + $0x148] sm:$0xff]
    %v67 = vld [vmem:[#allocation2 + $0x150] sm:$0xff]
    %v68 = vld [vmem:[#allocation2 + $0x158] sm:$0xff]
    %v69 = vld [vmem:[#allocation2 + $0x160] sm:$0xff]
    %v70 = vld [vmem:[#allocation2 + $0x168] sm:$0xff]
    %v71 = vld [vmem:[#allocation2 + $0x170] sm:$0xff]
    %v72 = vld [vmem:[#allocation2 + $0x178] sm:$0xff]
    %v73 = vld [vmem:[#allocation2 + $0x180] sm:$0xff]
    %v74 = vld [vmem:[#allocation2 + $0x188] sm:$0xff]
    %v75 = vld [vmem:[#allocation2 + $0x190] sm:$0xff]
    %v76 = vld [vmem:[#allocation2 + $0x198] sm:$0xff]
    %v77 = vld [vmem:[#allocation2 + $0x1a0] sm:$0xff]
    %v78 = vld [vmem:[#allocation2 + $0x1a8] sm:$0xff]
    %v79 = vld [vmem:[#allocation2 + $0x1b0] sm:$0xff]
    %v80 = vld [vmem:[#allocation2 + $0x1b8] sm:$0xff]
    %v81 = vld [vmem:[#allocation2 + $0x1c0] sm:$0xff]
    %v82 = vld [vmem:[#allocation2 + $0x1c8] sm:$0xff]
    %v83 = vld [vmem:[#allocation2 + $0x1d0] sm:$0xff]
    %v84 = vld [vmem:[#allocation2 + $0x1d8] sm:$0xff]
    %v85 = vld [vmem:[#allocation2 + $0x1e0] sm:$0xff]
    %v86 = vld [vmem:[#allocation2 + $0x1e8] sm:$0xff]
    %v87 = vld [vmem:[#allocation2 + $0x1f0] sm:$0xff]
    %v88 = vld [vmem:[#allocation2 + $0x1f8] sm:$0xff]
    %v89 = vld [vmem:[%s1] sm:$0xff]
    %v90 = vld [vmem:[%s1 + $0x8] sm:$0xff]
    %v91 = vld [vmem:[%s1 + $0x10] sm:$0xff]
    %v92 = vld [vmem:[%s1 + $0x18] sm:$0xff]
    %v93 = vld [vmem:[%s1 + $0x20] sm:$0xff]
    %v94 = vld [vmem:[%s1 + $0x28] sm:$0xff]
    %v95 = vld [vmem:[%s1 + $0x30] sm:$0xff]
    %v96 = vld [vmem:[%s1 + $0x38] sm:$0xff]
    %v97 = vld [vmem:[%s1 + $0x40] sm:$0xff]
    %v98 = vld [vmem:[%s1 + $0x48] sm:$0xff]
    %v99 = vld [vmem:[%s1 + $0x50] sm:$0xff]
    %v100 = vld [vmem:[%s1 + $0x58] sm:$0xff]
    %v101 = vld [vmem:[%s1 + $0x60] sm:$0xff]
    %v102 = vld [vmem:[%s1 + $0x68] sm:$0xff]
    %v103 = vld [vmem:[%s1 + $0x70] sm:$0xff]
    %v104 = vld [vmem:[%s1 + $0x78] sm:$0xff]
    %v105 = vld [vmem:[%s1 + $0x80] sm:$0xff]
    %v106 = vld [vmem:[%s1 + $0x88] sm:$0xff]
    %v107 = vld [vmem:[%s1 + $0x90] sm:$0xff]
    %v108 = vld [vmem:[%s1 + $0x98] sm:$0xff]
    %v109 = vld [vmem:[%s1 + $0xa0] sm:$0xff]
    %v110 = vld [vmem:[%s1 + $0xa8] sm:$0xff]
    %v111 = vld [vmem:[%s1 + $0xb0] sm:$0xff]
    %v112 = vld [vmem:[%s1 + $0xb8] sm:$0xff]
    %v113 = vld [vmem:[%s1 + $0xc0] sm:$0xff]
    %v114 = vld [vmem:[%s1 + $0xc8] sm:$0xff]
    %v115 = vld [vmem:[%s1 + $0xd0] sm:$0xff]
    %v116 = vld [vmem:[%s1 + $0xd8] sm:$0xff]
    %v117 = vld [vmem:[%s1 + $0xe0] sm:$0xff]
    %v118 = vld [vmem:[%s1 + $0xe8] sm:$0xff]
    %v119 = vld [vmem:[%s1 + $0xf0] sm:$0xff]
    %v120 = vld [vmem:[%s1 + $0xf8] sm:$0xff]
    %121 = vmatprep.subr.mxu0 0.0
    %122 = vmatpush1.msra.mxu0 %v104
    %123 = vmatprep.subr.mxu0 0.0
    %124 = vmatpush1.msra.mxu0 %v103
    %125 = vmatprep.subr.mxu0 0.0
    %126 = vmatpush1.msra.mxu0 %v102
    %127 = vmatprep.subr.mxu0 0.0
    %128 = vmatpush1.msra.mxu0 %v101
    %129 = vmatprep.subr.mxu0 0.0
    %130 = vmatpush1.msra.mxu0 %v100
    %131 = vmatprep.subr.mxu0 0.0
    %132 = vmatpush1.msra.mxu0 %v99
    %133 = vmatprep.subr.mxu0 0.0
    %134 = vmatpush1.msra.mxu0 %v98
    %135 = vmatprep.subr.mxu0 0.0
    %136 = vmatpush1.msra.mxu0 %v97
    %137 = vmatprep.subr.mxu0 0.0
    %138 = vmatpush1.msra.mxu0 %v96
    %139 = vmatprep.subr.mxu0 0.0
    %140 = vmatpush1.msra.mxu0 %v95
    %141 = vmatprep.subr.mxu0 0.0
    %142 = vmatpush1.msra.mxu0 %v94
    %143 = vmatprep.subr.mxu0 0.0
    %144 = vmatpush1.msra.mxu0 %v93
    %145 = vmatprep.subr.mxu0 0.0
    %146 = vmatpush1.msra.mxu0 %v92
    %147 = vmatprep.subr.mxu0 0.0
    %148 = vmatpush1.msra.mxu0 %v91
    %149 = vmatprep.subr.mxu0 0.0
    %150 = vmatpush1.msra.mxu0 %v90
    %151 = vmatprep.subr.mxu0 0.0
    %152 = vmatpush1.msra.mxu0 %v89
    %153 = vmatprep.subr.mxu0 0.0
    %154 = vmatpush2.msra.mxu0 %v120
    %155 = vmatprep.subr.mxu0 0.0
    %156 = vmatpush2.msra.mxu0 %v119
    %157 = vmatprep.subr.mxu0 0.0
    %158 = vmatpush2.msra.mxu0 %v118
    %159 = vmatprep.subr.mxu0 0.0
    %160 = vmatpush2.msra.mxu0 %v117
    %161 = vmatprep.subr.mxu0 0.0
    %162 = vmatpush2.msra.mxu0 %v116
    %163 = vmatprep.subr.mxu0 0.0
    %164 = vmatpush2.msra.mxu0 %v115
    %165 = vmatprep.subr.mxu0 0.0
    %166 = vmatpush2.msra.mxu0 %v114
    %167 = vmatprep.subr.mxu0 0.0
    %168 = vmatpush2.msra.mxu0 %v113
    %169 = vmatprep.subr.mxu0 0.0
    %170 = vmatpush2.msra.mxu0 %v112
    %171 = vmatprep.subr.mxu0 0.0
    %172 = vmatpush2.msra.mxu0 %v111
    %173 = vmatprep.subr.mxu0 0.0
    %174 = vmatpush2.msra.mxu0 %v110
    %175 = vmatprep.subr.mxu0 0.0
    %176 = vmatpush2.msra.mxu0 %v109
    %177 = vmatprep.subr.mxu0 0.0
    %178 = vmatpush2.msra.mxu0 %v108
    %179 = vmatprep.subr.mxu0 0.0
    %180 = vmatpush2.msra.mxu0 %v107
    %181 = vmatprep.subr.mxu0 0.0
    %182 = vmatpush2.msra.mxu0 %v106
    %183 = vmatprep.subr.mxu0 0.0
    %184 = vmatpush2.msra.mxu0 %v105
    %185 = vmatprep.mubr.f32.mxu0 %v26
    %186 = vmatmul.mubr.f32.gmra.mxu0 %v25
    %v187 = vpop.f32.mrf.mxu0
    %v188 = vadd.f32 0.0, %v187
    %v189 = vpop.f32.mrf.mxu0
    %190 = vmatprep.mubr.f32.mxu0 %v28
    %191 = vmatmul.mubr.f32.gmra.mxu0 %v27
    %v192 = vpop.f32.mrf.mxu0
    %v193 = vadd.f32 0.0, %v192
    %v194 = vpop.f32.mrf.mxu0
    %195 = vmatprep.mubr.f32.mxu0 %v30
    %196 = vmatmul.mubr.f32.gmra.mxu0 %v29
    %v197 = vpop.f32.mrf.mxu0
    %v198 = vadd.f32 0.0, %v197
    %v199 = vpop.f32.mrf.mxu0
    %200 = vmatprep.mubr.f32.mxu0 %v32
    %201 = vmatmul.mubr.f32.gmra.mxu0 %v31
    %v202 = vpop.f32.mrf.mxu0
    %v203 = vadd.f32 0.0, %v202
    %v204 = vpop.f32.mrf.mxu0
    %205 = vmatprep.mubr.f32.mxu0 %v34
    %206 = vmatmul.mubr.f32.gmra.mxu0 %v33
    %v207 = vpop.f32.mrf.mxu0
    %v208 = vadd.f32 0.0, %v207
    %v209 = vpop.f32.mrf.mxu0
    %210 = vmatprep.mubr.f32.mxu0 %v36
    %211 = vmatmul.mubr.f32.gmra.mxu0 %v35
    %v212 = vpop.f32.mrf.mxu0
    %v213 = vadd.f32 0.0, %v212
    %v214 = vpop.f32.mrf.mxu0
    %215 = vmatprep.mubr.f32.mxu0 %v38
    %216 = vmatmul.mubr.f32.gmra.mxu0 %v37
    %v217 = vpop.f32.mrf.mxu0
    %v218 = vadd.f32 0.0, %v217
    %v219 = vpop.f32.mrf.mxu0
    %220 = vmatprep.mubr.f32.mxu0 %v40
    %221 = vmatmul.mubr.f32.gmra.mxu0 %v39
    %v222 = vpop.f32.mrf.mxu0
    %v223 = vadd.f32 0.0, %v222
    %v224 = vpop.f32.mrf.mxu0
    %225 = vmatprep.mubr.f32.mxu0 %v42
    %226 = vmatmul.mubr.f32.gmra.mxu0 %v41
    %v227 = vpop.f32.mrf.mxu0
    %v228 = vadd.f32 0.0, %v227
    %v229 = vpop.f32.mrf.mxu0
    %230 = vmatprep.mubr.f32.mxu0 %v44
    %231 = vmatmul.mubr.f32.gmra.mxu0 %v43
    %v232 = vpop.f32.mrf.mxu0
    %v233 = vadd.f32 0.0, %v232
    %v234 = vpop.f32.mrf.mxu0
    %235 = vmatprep.mubr.f32.mxu0 %v46
    %236 = vmatmul.mubr.f32.gmra.mxu0 %v45
    %v237 = vpop.f32.mrf.mxu0
    %v238 = vadd.f32 0.0, %v237
    %v239 = vpop.f32.mrf.mxu0
    %240 = vmatprep.mubr.f32.mxu0 %v48
    %241 = vmatmul.mubr.f32.gmra.mxu0 %v47
    %v242 = vpop.f32.mrf.mxu0
    %v243 = vadd.f32 0.0, %v242
    %v244 = vpop.f32.mrf.mxu0
    %245 = vmatprep.mubr.f32.mxu0 %v50
    %246 = vmatmul.mubr.f32.gmra.mxu0 %v49
    %v247 = vpop.f32.mrf.mxu0
    %v248 = vadd.f32 0.0, %v247
    %v249 = vpop.f32.mrf.mxu0
    %250 = vmatprep.mubr.f32.mxu0 %v52
    %251 = vmatmul.mubr.f32.gmra.mxu0 %v51
    %v252 = vpop.f32.mrf.mxu0
    %v253 = vadd.f32 0.0, %v252
    %v254 = vpop.f32.mrf.mxu0
    %255 = vmatprep.mubr.f32.mxu0 %v54
    %256 = vmatmul.mubr.f32.gmra.mxu0 %v53
    %v257 = vpop.f32.mrf.mxu0
    %v258 = vadd.f32 0.0, %v257
    %v259 = vpop.f32.mrf.mxu0
    %260 = vmatprep.mubr.f32.mxu0 %v56
    %261 = vmatmul.mubr.f32.gmra.mxu0 %v55
    %v262 = vpop.f32.mrf.mxu0
    %v263 = vadd.f32 0.0, %v262
    %v264 = vpop.f32.mrf.mxu0
    %265 = vmatprep.mubr.f32.mxu0 %v58
    %266 = vmatmul.mubr.f32.gmra.mxu0 %v57
    %v267 = vpop.f32.mrf.mxu0
    %v268 = vadd.f32 0.0, %v267
    %v269 = vpop.f32.mrf.mxu0
    %270 = vmatprep.mubr.f32.mxu0 %v60
    %271 = vmatmul.mubr.f32.gmra.mxu0 %v59
    %v272 = vpop.f32.mrf.mxu0
    %v273 = vadd.f32 0.0, %v272
    %v274 = vpop.f32.mrf.mxu0
    %275 = vmatprep.mubr.f32.mxu0 %v62
    %276 = vmatmul.mubr.f32.gmra.mxu0 %v61
    %v277 = vpop.f32.mrf.mxu0
    %v278 = vadd.f32 0.0, %v277
    %v279 = vpop.f32.mrf.mxu0
    %280 = vmatprep.mubr.f32.mxu0 %v64
    %281 = vmatmul.mubr.f32.gmra.mxu0 %v63
    %v282 = vpop.f32.mrf.mxu0
    %v283 = vadd.f32 0.0, %v282
    %v284 = vpop.f32.mrf.mxu0
    %285 = vmatprep.mubr.f32.mxu0 %v66
    %286 = vmatmul.mubr.f32.gmra.mxu0 %v65
    %v287 = vpop.f32.mrf.mxu0
    %v288 = vadd.f32 0.0, %v287
    %v289 = vpop.f32.mrf.mxu0
    %290 = vmatprep.mubr.f32.mxu0 %v68
    %291 = vmatmul.mubr.f32.gmra.mxu0 %v67
    %v292 = vpop.f32.mrf.mxu0
    %v293 = vadd.f32 0.0, %v292
    %v294 = vpop.f32.mrf.mxu0
    %295 = vmatprep.mubr.f32.mxu0 %v70
    %296 = vmatmul.mubr.f32.gmra.mxu0 %v69
    %v297 = vpop.f32.mrf.mxu0
    %v298 = vadd.f32 0.0, %v297
    %v299 = vpop.f32.mrf.mxu0
    %300 = vmatprep.mubr.f32.mxu0 %v72
    %301 = vmatmul.mubr.f32.gmra.mxu0 %v71
    %v302 = vpop.f32.mrf.mxu0
    %v303 = vadd.f32 0.0, %v302
    %v304 = vpop.f32.mrf.mxu0
    %305 = vmatprep.mubr.f32.mxu0 %v74
    %306 = vmatmul.mubr.f32.gmra.mxu0 %v73
    %v307 = vpop.f32.mrf.mxu0
    %v308 = vadd.f32 0.0, %v307
    %v309 = vpop.f32.mrf.mxu0
    %310 = vmatprep.mubr.f32.mxu0 %v76
    %311 = vmatmul.mubr.f32.gmra.mxu0 %v75
    %v312 = vpop.f32.mrf.mxu0
    %v313 = vadd.f32 0.0, %v312
    %v314 = vpop.f32.mrf.mxu0
    %315 = vmatprep.mubr.f32.mxu0 %v78
    %316 = vmatmul.mubr.f32.gmra.mxu0 %v77
    %v317 = vpop.f32.mrf.mxu0
    %v318 = vadd.f32 0.0, %v317
    %v319 = vpop.f32.mrf.mxu0
    %320 = vmatprep.mubr.f32.mxu0 %v80
    %321 = vmatmul.mubr.f32.gmra.mxu0 %v79
    %v322 = vpop.f32.mrf.mxu0
    %v323 = vadd.f32 0.0, %v322
    %v324 = vpop.f32.mrf.mxu0
    %325 = vmatprep.mubr.f32.mxu0 %v82
    %326 = vmatmul.mubr.f32.gmra.mxu0 %v81
    %v327 = vpop.f32.mrf.mxu0
    %v328 = vadd.f32 0.0, %v327
    %v329 = vpop.f32.mrf.mxu0
    %330 = vmatprep.mubr.f32.mxu0 %v84
    %331 = vmatmul.mubr.f32.gmra.mxu0 %v83
    %v332 = vpop.f32.mrf.mxu0
    %v333 = vadd.f32 0.0, %v332
    %v334 = vpop.f32.mrf.mxu0
    %335 = vmatprep.mubr.f32.mxu0 %v86
    %336 = vmatmul.mubr.f32.gmra.mxu0 %v85
    %v337 = vpop.f32.mrf.mxu0
    %v338 = vadd.f32 0.0, %v337
    %v339 = vpop.f32.mrf.mxu0
    %340 = vmatprep.mubr.f32.mxu0 %v88
    %341 = vmatmul.mubr.f32.gmra.mxu0 %v87
    %v342 = vpop.f32.mrf.mxu0
    %v343 = vadd.f32 0.0, %v342
    %v344 = vpop.f32.mrf.mxu0
    %345 = vdwg.mxu0
    %vm346 = vcmask 261120
    %347 = vst.msk [vmem:[%s2] sm:$0xff] %vm346, %v188
    %348 = vst.msk [vmem:[%s2 + $0x8] sm:$0xff] %vm346, %v193
    %349 = vst.msk [vmem:[%s2 + $0x10] sm:$0xff] %vm346, %v198
    %350 = vst.msk [vmem:[%s2 + $0x18] sm:$0xff] %vm346, %v203
    %351 = vst.msk [vmem:[%s2 + $0x20] sm:$0xff] %vm346, %v208
    %352 = vst.msk [vmem:[%s2 + $0x28] sm:$0xff] %vm346, %v213
    %353 = vst.msk [vmem:[%s2 + $0x30] sm:$0xff] %vm346, %v218
    %354 = vst.msk [vmem:[%s2 + $0x38] sm:$0xff] %vm346, %v223
    %355 = vst.msk [vmem:[%s2 + $0x40] sm:$0xff] %vm346, %v228
    %356 = vst.msk [vmem:[%s2 + $0x48] sm:$0xff] %vm346, %v233
    %357 = vst.msk [vmem:[%s2 + $0x50] sm:$0xff] %vm346, %v238
    %358 = vst.msk [vmem:[%s2 + $0x58] sm:$0xff] %vm346, %v243
    %359 = vst.msk [vmem:[%s2 + $0x60] sm:$0xff] %vm346, %v248
    %360 = vst.msk [vmem:[%s2 + $0x68] sm:$0xff] %vm346, %v253
    %361 = vst.msk [vmem:[%s2 + $0x70] sm:$0xff] %vm346, %v258
    %362 = vst.msk [vmem:[%s2 + $0x78] sm:$0xff] %vm346, %v263
    %363 = vst.msk [vmem:[%s2 + $0x80] sm:$0xff] %vm346, %v268
    %364 = vst.msk [vmem:[%s2 + $0x88] sm:$0xff] %vm346, %v273
    %365 = vst.msk [vmem:[%s2 + $0x90] sm:$0xff] %vm346, %v278
    %366 = vst.msk [vmem:[%s2 + $0x98] sm:$0xff] %vm346, %v283
    %367 = vst.msk [vmem:[%s2 + $0xa0] sm:$0xff] %vm346, %v288
    %368 = vst.msk [vmem:[%s2 + $0xa8] sm:$0xff] %vm346, %v293
    %369 = vst.msk [vmem:[%s2 + $0xb0] sm:$0xff] %vm346, %v298
    %370 = vst.msk [vmem:[%s2 + $0xb8] sm:$0xff] %vm346, %v303
    %371 = vst.msk [vmem:[%s2 + $0xc0] sm:$0xff] %vm346, %v308
    %372 = vst.msk [vmem:[%s2 + $0xc8] sm:$0xff] %vm346, %v313
    %373 = vst.msk [vmem:[%s2 + $0xd0] sm:$0xff] %vm346, %v318
    %374 = vst.msk [vmem:[%s2 + $0xd8] sm:$0xff] %vm346, %v323
    %375 = vst.msk [vmem:[%s2 + $0xe0] sm:$0xff] %vm346, %v328
    %376 = vst.msk [vmem:[%s2 + $0xe8] sm:$0xff] %vm346, %v333
    %377 = vst.msk [vmem:[%s2 + $0xf0] sm:$0xff] %vm346, %v338
    %378 = vst.msk [vmem:[%s2 + $0xf8] sm:$0xff] %vm346, %v343
    // Predicated region
    $region14: #{evolve_gcn_h_forward.2} parent=1 // pred_check
      _
    $region15: #{evolve_gcn_h_forward.2} parent=1 // pred_check_branch
      %380 = sbr.rel (0) target = $region17
    $region16: #{evolve_gcn_h_forward.2} parent=1 // pred_region
      _
    $region17: #{evolve_gcn_h_forward.2} parent=1 // pred_fallthru
      _
    // Predicated region
    $region18: #{evolve_gcn_h_forward.2} parent=1 // pred_check
      _
    $region19: #{evolve_gcn_h_forward.2} parent=1 // pred_check_branch
      %382 = sbr.rel (0) target = $region21
    $region20: #{evolve_gcn_h_forward.2} parent=1 // pred_region
      _
    $region21: #{evolve_gcn_h_forward.2} parent=1 // pred_fallthru
      _
    %383 = vsyncpa [#allocation3], 1

// kernel: evolve_gcn_h_forward.3
$region0: #{evolve_gcn_h_forward.3}
  #allocation0 [shape = 'u32[]', space=smem, size = 0x4, offset = 0x4, fixed_abs, tag = 'smem constant byte address 0x4 - core index']
  #allocation1 [shape = 'u32[144,128]{1,0:T(1,128)}', space=vmem, size = 0x12000, scoped, tag = 'internal scratch']
  #allocation2 [shape = 'f32[32,32]{1,0:T(8,128)}', space=vmem, size = 0x4000, scoped, tag = 'scratch operand']
  %s0 = inlined_call_operand.vmem [shape: f32[32,32], index: 0, kind: input, shape index: {}]
  %s1 = inlined_call_operand.vmem [shape: f32[32,32], index: 1, kind: input, shape index: {}]
  %s2 = inlined_call_operand.vmem [shape: f32[96,32], index: 2, kind: input, shape index: {}]
  %s3 = inlined_call_operand.vmem [shape: f32[64,32], index: 3, kind: input, shape index: {}]
  %s4 = inlined_call_operand.vmem [shape: f32[32,32], index: 4, kind: input, shape index: {}]
  %s5 = inlined_call_operand.vmem [shape: f32[96,32], index: 5, kind: input, shape index: {}]
  %s6 = inlined_call_operand.vmem [shape: bf16[256,32], index: 6, kind: input, shape index: {}]
  %s7 = inlined_call_operand.vmem [shape: bf16[4,256,256], index: 7, kind: input, shape index: {}]
  %s8 = inlined_call_operand.vmem [shape: f32[4,256,32], index: 8, kind: output, shape index: {}]
  %s9 = sld [smem:[#allocation0]]
  $region69: #{evolve_gcn_h_forward.3} parent=0
    _
  %s11 = ssub.s32 1, %s9
  %s12 = scalar_select 0, %s11, %s9
  loop: start=0, step=1, limit=6
  $region2: #{evolve_gcn_h_forward.3} parent=0 // loop_pre_header
    _
  $region3: #{evolve_gcn_h_forward.3} parent=0 // loop_header
    %s14 = sphi 0, %s18
    %p15 = scmp.ge.s32.totalorder %s14, 6
    %s22 = sphi 0, %s22
    %s24 = sphi 0, %s22
    %s25 = sphi 0, %s24
    %s39 = sphi 0, %s25
    %s43 = sphi 0, %s43
    %s45 = sphi 0, %s43
    %s46 = sphi 0, %s45
    %s60 = sphi 0, %s46
    %s64 = sphi 0, %s64
    %s66 = sphi 0, %s64
    %s67 = sphi 0, %s66
    %s81 = sphi 0, %s67
    %s85 = sphi 0, %s85
    %s87 = sphi 0, %s85
    %s88 = sphi 0, %s87
    %s102 = sphi 0, %s88
    %s106 = sphi 0, %s106
    %s108 = sphi 0, %s106
    %s109 = sphi 0, %s108
    %s123 = sphi 0, %s109
    %s127 = sphi 0, %s127
    %s129 = sphi 0, %s127
    %s130 = sphi 0, %s129
    %s144 = sphi 0, %s130
    %s148 = sphi 0, %s148
    %s150 = sphi 0, %s148
    %s151 = sphi 0, %s150
    %s165 = sphi 0, %s151
    %s171 = sphi 0, %s173
    %s174 = sphi 0, %s171
    %s175 = sphi 0, %s174
    %s191 = sphi 0, %s175
    %s197 = sphi 0, %s199
    %s200 = sphi 0, %s197
    %s201 = sphi 0, %s200
    %s217 = sphi 0, %s201
  $region4: #{evolve_gcn_h_forward.3} parent=0 // loop_header_branch
    %17 = sbr.rel (%p15) target = $region8
  $region5: #{evolve_gcn_h_forward.3} parent=0 // loop_body
    %s19 = ssub.s32 %s14, 1
    %s20 = ssub.s32 %s14, 2
    %s21 = sadd.s32 %s14, 1
    %s23 = sadd.s32 %s22, 1
    %p26 = scmp.eq.s32.totalorder %s14, 3
    %p27 = scmp.ne.s32.totalorder %s22, %s24
    %p28 = scmp.eq.s32.totalorder %s14, 0
    %p29 = por %p27, %p28
    %p30 = scmp.ne.s32.totalorder %s22, %s24
    %p31 = scmp.eq.s32.totalorder %s19, 3
    %p32 = por %p30, %p31
    %p33 = scmp.ne.s32.totalorder %s24, %s25
    %p34 = scmp.eq.s32.totalorder %s19, 0
    %p35 = por %p33, %p34
    %p36 = scmp.ne.s32.totalorder %s24, %s25
    %p37 = scmp.eq.s32.totalorder %s20, 3
    %p38 = por %p36, %p37
    %p40 = scmp.ne.s32.totalorder %s25, %s39
    %p41 = scmp.eq.s32.totalorder %s20, 0
    %p42 = por %p40, %p41
    %s44 = sadd.s32 %s43, 1
    %p47 = scmp.eq.s32.totalorder %s14, 3
    %p48 = scmp.ne.s32.totalorder %s43, %s45
    %p49 = scmp.eq.s32.totalorder %s14, 0
    %p50 = por %p48, %p49
    %p51 = scmp.ne.s32.totalorder %s43, %s45
    %p52 = scmp.eq.s32.totalorder %s19, 3
    %p53 = por %p51, %p52
    %p54 = scmp.ne.s32.totalorder %s45, %s46
    %p55 = scmp.eq.s32.totalorder %s19, 0
    %p56 = por %p54, %p55
    %p57 = scmp.ne.s32.totalorder %s45, %s46
    %p58 = scmp.eq.s32.totalorder %s20, 3
    %p59 = por %p57, %p58
    %p61 = scmp.ne.s32.totalorder %s46, %s60
    %p62 = scmp.eq.s32.totalorder %s20, 0
    %p63 = por %p61, %p62
    %s65 = sadd.s32 %s64, 1
    %p68 = scmp.eq.s32.totalorder %s14, 3
    %p69 = scmp.ne.s32.totalorder %s64, %s66
    %p70 = scmp.eq.s32.totalorder %s14, 0
    %p71 = por %p69, %p70
    %p72 = scmp.ne.s32.totalorder %s64, %s66
    %p73 = scmp.eq.s32.totalorder %s19, 3
    %p74 = por %p72, %p73
    %p75 = scmp.ne.s32.totalorder %s66, %s67
    %p76 = scmp.eq.s32.totalorder %s19, 0
    %p77 = por %p75, %p76
    %p78 = scmp.ne.s32.totalorder %s66, %s67
    %p79 = scmp.eq.s32.totalorder %s20, 3
    %p80 = por %p78, %p79
    %p82 = scmp.ne.s32.totalorder %s67, %s81
    %p83 = scmp.eq.s32.totalorder %s20, 0
    %p84 = por %p82, %p83
    %s86 = sadd.s32 %s85, 1
    %p89 = scmp.eq.s32.totalorder %s14, 3
    %p90 = scmp.ne.s32.totalorder %s85, %s87
    %p91 = scmp.eq.s32.totalorder %s14, 0
    %p92 = por %p90, %p91
    %p93 = scmp.ne.s32.totalorder %s85, %s87
    %p94 = scmp.eq.s32.totalorder %s19, 3
    %p95 = por %p93, %p94
    %p96 = scmp.ne.s32.totalorder %s87, %s88
    %p97 = scmp.eq.s32.totalorder %s19, 0
    %p98 = por %p96, %p97
    %p99 = scmp.ne.s32.totalorder %s87, %s88
    %p100 = scmp.eq.s32.totalorder %s20, 3
    %p101 = por %p99, %p100
    %p103 = scmp.ne.s32.totalorder %s88, %s102
    %p104 = scmp.eq.s32.totalorder %s20, 0
    %p105 = por %p103, %p104
    %s107 = sadd.s32 %s106, 1
    %p110 = scmp.eq.s32.totalorder %s14, 3
    %p111 = scmp.ne.s32.totalorder %s106, %s108
    %p112 = scmp.eq.s32.totalorder %s14, 0
    %p113 = por %p111, %p112
    %p114 = scmp.ne.s32.totalorder %s106, %s108
    %p115 = scmp.eq.s32.totalorder %s19, 3
    %p116 = por %p114, %p115
    %p117 = scmp.ne.s32.totalorder %s108, %s109
    %p118 = scmp.eq.s32.totalorder %s19, 0
    %p119 = por %p117, %p118
    %p120 = scmp.ne.s32.totalorder %s108, %s109
    %p121 = scmp.eq.s32.totalorder %s20, 3
    %p122 = por %p120, %p121
    %p124 = scmp.ne.s32.totalorder %s109, %s123
    %p125 = scmp.eq.s32.totalorder %s20, 0
    %p126 = por %p124, %p125
    %s128 = sadd.s32 %s127, 1
    %p131 = scmp.eq.s32.totalorder %s14, 3
    %p132 = scmp.ne.s32.totalorder %s127, %s129
    %p133 = scmp.eq.s32.totalorder %s14, 0
    %p134 = por %p132, %p133
    %p135 = scmp.ne.s32.totalorder %s127, %s129
    %p136 = scmp.eq.s32.totalorder %s19, 3
    %p137 = por %p135, %p136
    %p138 = scmp.ne.s32.totalorder %s129, %s130
    %p139 = scmp.eq.s32.totalorder %s19, 0
    %p140 = por %p138, %p139
    %p141 = scmp.ne.s32.totalorder %s129, %s130
    %p142 = scmp.eq.s32.totalorder %s20, 3
    %p143 = por %p141, %p142
    %p145 = scmp.ne.s32.totalorder %s130, %s144
    %p146 = scmp.eq.s32.totalorder %s20, 0
    %p147 = por %p145, %p146
    %s149 = sadd.s32 %s148, 1
    %p152 = scmp.eq.s32.totalorder %s14, 3
    %p153 = scmp.ne.s32.totalorder %s148, %s150
    %p154 = scmp.eq.s32.totalorder %s14, 0
    %p155 = por %p153, %p154
    %p156 = scmp.ne.s32.totalorder %s148, %s150
    %p157 = scmp.eq.s32.totalorder %s19, 3
    %p158 = por %p156, %p157
    %p159 = scmp.ne.s32.totalorder %s150, %s151
    %p160 = scmp.eq.s32.totalorder %s19, 0
    %p161 = por %p159, %p160
    %p162 = scmp.ne.s32.totalorder %s150, %s151
    %p163 = scmp.eq.s32.totalorder %s20, 3
    %p164 = por %p162, %p163
    %p166 = scmp.ne.s32.totalorder %s151, %s165
    %p167 = scmp.eq.s32.totalorder %s20, 0
    %p168 = por %p166, %p167
    %s169 = ssub.s32 %s14, %s21
    %p170 = scmp.eq.s32.totalorder %s169, 0
    %s172 = sadd.s32 %s171, 1
    %s173 = scalar_select %p170, %s171, %s172
    %p176 = pneg %p170
    %p177 = scmp.eq.s32.totalorder %s14, 3
    %p178 = por %p176, %p177
    %p179 = scmp.ne.s32.totalorder %s171, %s174
    %p180 = scmp.eq.s32.totalorder %s14, 0
    %p181 = por %p179, %p180
    %p182 = scmp.ne.s32.totalorder %s171, %s174
    %p183 = scmp.eq.s32.totalorder %s19, 3
    %p184 = por %p182, %p183
    %p185 = scmp.ne.s32.totalorder %s174, %s175
    %p186 = scmp.eq.s32.totalorder %s19, 0
    %p187 = por %p185, %p186
    %p188 = scmp.ne.s32.totalorder %s174, %s175
    %p189 = scmp.eq.s32.totalorder %s20, 3
    %p190 = por %p188, %p189
    %p192 = scmp.ne.s32.totalorder %s175, %s191
    %p193 = scmp.eq.s32.totalorder %s20, 0
    %p194 = por %p192, %p193
    %s195 = ssub.s32 %s14, %s21
    %p196 = scmp.eq.s32.totalorder %s195, 0
    %s198 = sadd.s32 %s197, 1
    %s199 = scalar_select %p196, %s197, %s198
    %p202 = pneg %p196
    %p203 = scmp.eq.s32.totalorder %s14, 3
    %p204 = por %p202, %p203
    %p205 = scmp.ne.s32.totalorder %s197, %s200
    %p206 = scmp.eq.s32.totalorder %s14, 0
    %p207 = por %p205, %p206
    %p208 = scmp.ne.s32.totalorder %s197, %s200
    %p209 = scmp.eq.s32.totalorder %s19, 3
    %p210 = por %p208, %p209
    %p211 = scmp.ne.s32.totalorder %s200, %s201
    %p212 = scmp.eq.s32.totalorder %s19, 0
    %p213 = por %p211, %p212
    %p214 = scmp.ne.s32.totalorder %s200, %s201
    %p215 = scmp.eq.s32.totalorder %s20, 3
    %p216 = por %p214, %p215
    %p218 = scmp.ne.s32.totalorder %s201, %s217
    %p219 = scmp.eq.s32.totalorder %s20, 0
    %p220 = por %p218, %p219
    %p221 = scmp.le.s32.totalorder 1, %s14
    %p222 = scmp.lt.s32.totalorder %s14, 5
    %p223 = pnand %p221, %p222
    %p224 = pneg %p223
    // Predicated region
    $region9: #{evolve_gcn_h_forward.3} parent=5 // pred_check
      _
    $region10: #{evolve_gcn_h_forward.3} parent=5 // pred_check_branch
      %226 = sbr.rel (%p223) target = $region12
    $region11: #{evolve_gcn_h_forward.3} parent=5 // pred_region
      %s227 = ssub.s32 %s14, 1
      // Predicated region
      $region13: #{evolve_gcn_h_forward.3} parent=11 // pred_check
        %p228 = pneg %p35
      $region14: #{evolve_gcn_h_forward.3} parent=11 // pred_check_branch
        %230 = sbr.rel (%p228) target = $region16
      $region15: #{evolve_gcn_h_forward.3} parent=11 // pred_region
        _
      $region16: #{evolve_gcn_h_forward.3} parent=11 // pred_fallthru
        _
      // Predicated region
      $region17: #{evolve_gcn_h_forward.3} parent=11 // pred_check
        %p231 = pneg %p56
      $region18: #{evolve_gcn_h_forward.3} parent=11 // pred_check_branch
        %233 = sbr.rel (%p231) target = $region20
      $region19: #{evolve_gcn_h_forward.3} parent=11 // pred_region
        _
      $region20: #{evolve_gcn_h_forward.3} parent=11 // pred_fallthru
        _
      // Predicated region
      $region21: #{evolve_gcn_h_forward.3} parent=11 // pred_check
        %p234 = pneg %p77
      $region22: #{evolve_gcn_h_forward.3} parent=11 // pred_check_branch
        %236 = sbr.rel (%p234) target = $region24
      $region23: #{evolve_gcn_h_forward.3} parent=11 // pred_region
        _
      $region24: #{evolve_gcn_h_forward.3} parent=11 // pred_fallthru
        _
      // Predicated region
      $region25: #{evolve_gcn_h_forward.3} parent=11 // pred_check
        %p237 = pneg %p98
      $region26: #{evolve_gcn_h_forward.3} parent=11 // pred_check_branch
        %239 = sbr.rel (%p237) target = $region28
      $region27: #{evolve_gcn_h_forward.3} parent=11 // pred_region
        _
      $region28: #{evolve_gcn_h_forward.3} parent=11 // pred_fallthru
        _
      // Predicated region
      $region29: #{evolve_gcn_h_forward.3} parent=11 // pred_check
        %p240 = pneg %p119
      $region30: #{evolve_gcn_h_forward.3} parent=11 // pred_check_branch
        %242 = sbr.rel (%p240) target = $region32
      $region31: #{evolve_gcn_h_forward.3} parent=11 // pred_region
        _
      $region32: #{evolve_gcn_h_forward.3} parent=11 // pred_fallthru
        _
      // Predicated region
      $region33: #{evolve_gcn_h_forward.3} parent=11 // pred_check
        %p243 = pneg %p140
      $region34: #{evolve_gcn_h_forward.3} parent=11 // pred_check_branch
        %245 = sbr.rel (%p243) target = $region36
      $region35: #{evolve_gcn_h_forward.3} parent=11 // pred_region
        _
      $region36: #{evolve_gcn_h_forward.3} parent=11 // pred_fallthru
        _
      // Predicated region
      $region37: #{evolve_gcn_h_forward.3} parent=11 // pred_check
        %p246 = pneg %p161
      $region38: #{evolve_gcn_h_forward.3} parent=11 // pred_check_branch
        %248 = sbr.rel (%p246) target = $region40
      $region39: #{evolve_gcn_h_forward.3} parent=11 // pred_region
        _
      $region40: #{evolve_gcn_h_forward.3} parent=11 // pred_fallthru
        _
    $region12: #{evolve_gcn_h_forward.3} parent=5 // pred_fallthru
      _
    %p249 = scmp.lt.s32.totalorder %s14, 4
    // Predicated region
    $region41: #{evolve_gcn_h_forward.3} parent=5 // pred_check
      %p250 = pneg %p249
    $region42: #{evolve_gcn_h_forward.3} parent=5 // pred_check_branch
      %252 = sbr.rel (%p250) target = $region44
    $region43: #{evolve_gcn_h_forward.3} parent=5 // pred_region
      // Predicated region
      $region45: #{evolve_gcn_h_forward.3} parent=43 // pred_check
        %p253 = pneg %p181
      $region46: #{evolve_gcn_h_forward.3} parent=43 // pred_check_branch
        %255 = sbr.rel (%p253) target = $region48
      $region47: #{evolve_gcn_h_forward.3} parent=43 // pred_region
        %p256 = scmp.lt.s32.totalorder %s14, 3
        %s257 = scalar_select %p256, %s14, 3
        %s258 = smul.addr %s257, 64
        %s259 = smul.addr %s258, 4
        %s260 = scalar_lea.vmem %s7, %s259
      $region48: #{evolve_gcn_h_forward.3} parent=43 // pred_fallthru
        _
    $region44: #{evolve_gcn_h_forward.3} parent=5 // pred_fallthru
      _
    %p261 = scmp.le.s32.totalorder 1, %s14
    %p262 = scmp.lt.s32.totalorder %s14, 5
    %p263 = pnand %p261, %p262
    %p264 = pneg %p263
    // Predicated region
    $region49: #{evolve_gcn_h_forward.3} parent=5 // pred_check
      _
    $region50: #{evolve_gcn_h_forward.3} parent=5 // pred_check_branch
      %266 = sbr.rel (%p263) target = $region52
    $region51: #{evolve_gcn_h_forward.3} parent=5 // pred_region
      %s267 = ssub.s32 %s14, 1
      %p268 = pneg %p35
      %p269 = pneg %p32
      %p270 = pneg %p56
      %p271 = pneg %p53
      %p272 = pneg %p77
      %p273 = pneg %p74
      %p274 = pneg %p98
      %p275 = pneg %p95
      %p276 = pneg %p119
      %p277 = pneg %p116
      %p278 = pneg %p140
      %p279 = pneg %p137
      %p280 = pneg %p161
      %p281 = pneg %p158
      %p282 = scmp.lt.s32.totalorder %s19, 3
      %s283 = scalar_select %p282, %s19, 3
      %s284 = smul.addr %s283, 64
      %s285 = smul.addr %s284, 4
      %s286 = scalar_lea.vmem %s7, %s285
      %p287 = pneg %p187
      %p288 = pneg %p184
      %p289 = pneg %p213
      %p290 = pneg %p210
      %p291 = scmp.lt.s32.totalorder %s19, 3
      %s292 = scalar_select %p291, %s19, 3
      %s293 = smul.addr %s292, 32
      %s294 = smul.addr %s293, 8
      %s295 = scalar_lea.vmem %s8, %s294
      %p296 = scmp.lt.s32.totalorder %s19, 3
      %s297 = scalar_select %p296, %s19, 3
      %s298 = smul.addr %s297, 64
      %s299 = smul.addr %s298, 4
      %s300 = scalar_lea.vmem %s7, %s299
      %p301 = scmp.lt.s32.totalorder %s19, 3
      %s302 = scalar_select %p301, %s19, 3
      %s303 = smul.addr %s302, 32
      %s304 = smul.addr %s303, 8
      %s305 = scalar_lea.vmem %s8, %s304
      %p307 = scmp.eq.s32.totalorder %s19, 0
      // Predicated region
      $region53: #{evolve_gcn_h_forward.3} parent=51 // pred_check
        %p308 = pneg %p307
      $region54: #{evolve_gcn_h_forward.3} parent=51 // pred_check_branch
        %310 = sbr.rel (%p308) target = $region56
      $region55: #{evolve_gcn_h_forward.3} parent=51 // pred_region
        %v311 = vld [vmem:[%s1] sm:$0xff]
        %v312 = vld [vmem:[%s1 + $0x8] sm:$0xff]
        %v313 = vld [vmem:[%s1 + $0x10] sm:$0xff]
        %v314 = vld [vmem:[%s1 + $0x18] sm:$0xff]
        %vm315 = vcmask 261120
        %316 = vst.msk [vmem:[#allocation2] sm:$0xff] %vm315, %v311
        %317 = vst.msk [vmem:[#allocation2 + $0x8] sm:$0xff] %vm315, %v312
        %318 = vst.msk [vmem:[#allocation2 + $0x10] sm:$0xff] %vm315, %v313
        %319 = vst.msk [vmem:[#allocation2 + $0x18] sm:$0xff] %vm315, %v314
      $region56: #{evolve_gcn_h_forward.3} parent=51 // pred_fallthru
        _
      %v320 = vld [vmem:[%s0] sm:$0xff]
      %v321 = vld [vmem:[%s0 + $0x8] sm:$0xff]
      %v322 = vld [vmem:[%s0 + $0x10] sm:$0xff]
      %v323 = vld [vmem:[%s0 + $0x18] sm:$0xff]
      %v324 = vld [vmem:[#allocation2] sm:$0xff]
      %v325 = vld [vmem:[#allocation2 + $0x8] sm:$0xff]
      %v326 = vld [vmem:[#allocation2 + $0x10] sm:$0xff]
      %v327 = vld [vmem:[#allocation2 + $0x18] sm:$0xff]
      %v328 = vld [vmem:[%s2] sm:$0xff]
      %v329 = vld [vmem:[%s2 + $0x8] sm:$0xff]
      %v330 = vld [vmem:[%s2 + $0x10] sm:$0xff]
      %v331 = vld [vmem:[%s2 + $0x18] sm:$0xff]
      %v332 = vld [vmem:[%s2 + $0x20] sm:$0xff]
      %v333 = vld [vmem:[%s2 + $0x28] sm:$0xff]
      %v334 = vld [vmem:[%s2 + $0x30] sm:$0xff]
      %v335 = vld [vmem:[%s2 + $0x38] sm:$0xff]
      %v336 = vld [vmem:[%s2 + $0x40] sm:$0xff]
      %v337 = vld [vmem:[%s2 + $0x48] sm:$0xff]
      %v338 = vld [vmem:[%s2 + $0x50] sm:$0xff]
      %v339 = vld [vmem:[%s2 + $0x58] sm:$0xff]
      %v340 = vld [vmem:[%s5] sm:$0xff]
      %v341 = vld [vmem:[%s5 + $0x8] sm:$0xff]
      %v342 = vld [vmem:[%s5 + $0x10] sm:$0xff]
      %v343 = vld [vmem:[%s5 + $0x18] sm:$0xff]
      %v344 = vld [vmem:[%s5 + $0x20] sm:$0xff]
      %v345 = vld [vmem:[%s5 + $0x28] sm:$0xff]
      %v346 = vld [vmem:[%s5 + $0x30] sm:$0xff]
      %v347 = vld [vmem:[%s5 + $0x38] sm:$0xff]
      %v348 = vld [vmem:[%s5 + $0x40] sm:$0xff]
      %v349 = vld [vmem:[%s5 + $0x48] sm:$0xff]
      %v350 = vld [vmem:[%s5 + $0x50] sm:$0xff]
      %v351 = vld [vmem:[%s5 + $0x58] sm:$0xff]
      %vm352 = vcmask 261120
      %v354 = vsel %vm352, %v328, 0
      %v357 = vsel %vm352, %v329, 0
      %v360 = vsel %vm352, %v330, 0
      %v363 = vsel %vm352, %v331, 0
      %v366 = vsel %vm352, %v332, 0
      %v369 = vsel %vm352, %v333, 0
      %v372 = vsel %vm352, %v334, 0
      %v375 = vsel %vm352, %v335, 0
      %v378 = vsel %vm352, %v336, 0
      %v381 = vsel %vm352, %v337, 0
      %v384 = vsel %vm352, %v338, 0
      %v387 = vsel %vm352, %v339, 0
      %389 = vmatprep.subr.mxu0 0.0
      %390 = vmatpush1.msra.mxu0 0.0
      %391 = vmatprep.subr.mxu0 0.0
      %392 = vmatpush1.msra.mxu0 0.0
      %393 = vmatprep.subr.mxu0 0.0
      %394 = vmatpush1.msra.mxu0 0.0
      %395 = vmatprep.subr.mxu0 0.0
      %396 = vmatpush1.msra.mxu0 0.0
      %397 = vmatprep.subr.mxu0 0.0
      %398 = vmatpush1.msra.mxu0 0.0
      %399 = vmatprep.subr.mxu0 0.0
      %400 = vmatpush1.msra.mxu0 0.0
      %401 = vmatprep.subr.mxu0 0.0
      %402 = vmatpush1.msra.mxu0 0.0
      %403 = vmatprep.subr.mxu0 0.0
      %404 = vmatpush1.msra.mxu0 0.0
      %405 = vmatprep.subr.mxu0 0.0
      %406 = vmatpush1.msra.mxu0 0.0
      %407 = vmatprep.subr.mxu0 0.0
      %408 = vmatpush1.msra.mxu0 0.0
      %409 = vmatprep.subr.mxu0 0.0
      %410 = vmatpush1.msra.mxu0 0.0
      %411 = vmatprep.subr.mxu0 0.0
      %412 = vmatpush1.msra.mxu0 0.0
      %413 = vmatprep.subr.mxu0 0.0
      %414 = vmatpush1.msra.mxu0 %v323
      %415 = vmatprep.subr.mxu0 0.0
      %416 = vmatpush1.msra.mxu0 %v322
      %417 = vmatprep.subr.mxu0 0.0
      %418 = vmatpush1.msra.mxu0 %v321
      %419 = vmatprep.subr.mxu0 0.0
      %420 = vmatpush1.msra.mxu0 %v320
      %421 = vmatprep.subr.mxu0 0.0
      %422 = vmatpush2.msra.mxu0 0.0
      %423 = vmatprep.subr.mxu0 0.0
      %424 = vmatpush2.msra.mxu0 0.0
      %425 = vmatprep.subr.mxu0 0.0
      %426 = vmatpush2.msra.mxu0 0.0
      %427 = vmatprep.subr.mxu0 0.0
      %428 = vmatpush2.msra.mxu0 0.0
      %429 = vmatprep.subr.mxu0 0.0
      %430 = vmatpush2.msra.mxu0 0.0
      %431 = vmatprep.subr.mxu0 0.0
      %432 = vmatpush2.msra.mxu0 0.0
      %433 = vmatprep.subr.mxu0 0.0
      %434 = vmatpush2.msra.mxu0 0.0
      %435 = vmatprep.subr.mxu0 0.0
      %436 = vmatpush2.msra.mxu0 0.0
      %437 = vmatprep.subr.mxu0 0.0
      %438 = vmatpush2.msra.mxu0 0.0
      %439 = vmatprep.subr.mxu0 0.0
      %440 = vmatpush2.msra.mxu0 0.0
      %441 = vmatprep.subr.mxu0 0.0
      %442 = vmatpush2.msra.mxu0 0.0
      %443 = vmatprep.subr.mxu0 0.0
      %444 = vmatpush2.msra.mxu0 0.0
      %445 = vmatprep.subr.mxu0 0.0
      %446 = vmatpush2.msra.mxu0 0.0
      %447 = vmatprep.subr.mxu0 0.0
      %448 = vmatpush2.msra.mxu0 0.0
      %449 = vmatprep.subr.mxu0 0.0
      %450 = vmatpush2.msra.mxu0 0.0
      %451 = vmatprep.subr.mxu0 0.0
      %452 = vmatpush2.msra.mxu0 0.0
      %453 = vmatprep.mubr.f32.mxu0 0.0
      %454 = vmatmul.mubr.f32.gmra.mxu0 %v354
      %v455 = vpop.f32.mrf.mxu0
      %v456 = vadd.f32 %v340, %v455
      %v457 = vpop.f32.mrf.mxu0
      %458 = vmatprep.mubr.f32.mxu0 0.0
      %459 = vmatmul.mubr.f32.gmra.mxu0 %v357
      %v460 = vpop.f32.mrf.mxu0
      %v461 = vadd.f32 %v341, %v460
      %v462 = vpop.f32.mrf.mxu0
      %463 = vmatprep.mubr.f32.mxu0 0.0
      %464 = vmatmul.mubr.f32.gmra.mxu0 %v360
      %v465 = vpop.f32.mrf.mxu0
      %v466 = vadd.f32 %v342, %v465
      %v467 = vpop.f32.mrf.mxu0
      %468 = vmatprep.mubr.f32.mxu0 0.0
      %469 = vmatmul.mubr.f32.gmra.mxu0 %v363
      %v470 = vpop.f32.mrf.mxu0
      %v471 = vadd.f32 %v343, %v470
      %v472 = vpop.f32.mrf.mxu0
      %473 = vmatprep.mubr.f32.mxu0 0.0
      %474 = vmatmul.mubr.f32.gmra.mxu0 %v366
      %v475 = vpop.f32.mrf.mxu0
      %v476 = vadd.f32 %v344, %v475
      %v477 = vpop.f32.mrf.mxu0
      %478 = vmatprep.mubr.f32.mxu0 0.0
      %479 = vmatmul.mubr.f32.gmra.mxu0 %v369
      %v480 = vpop.f32.mrf.mxu0
      %v481 = vadd.f32 %v345, %v480
      %v482 = vpop.f32.mrf.mxu0
      %483 = vmatprep.mubr.f32.mxu0 0.0
      %484 = vmatmul.mubr.f32.gmra.mxu0 %v372
      %v485 = vpop.f32.mrf.mxu0
      %v486 = vadd.f32 %v346, %v485
      %v487 = vpop.f32.mrf.mxu0
      %488 = vmatprep.mubr.f32.mxu0 0.0
      %489 = vmatmul.mubr.f32.gmra.mxu0 %v375
      %v490 = vpop.f32.mrf.mxu0
      %v491 = vadd.f32 %v347, %v490
      %v492 = vpop.f32.mrf.mxu0
      %493 = vmatprep.mubr.f32.mxu0 0.0
      %494 = vmatmul.mubr.f32.gmra.mxu0 %v378
      %v495 = vpop.f32.mrf.mxu0
      %v496 = vadd.f32 %v348, %v495
      %v497 = vpop.f32.mrf.mxu0
      %498 = vmatprep.mubr.f32.mxu0 0.0
      %499 = vmatmul.mubr.f32.gmra.mxu0 %v381
      %v500 = vpop.f32.mrf.mxu0
      %v501 = vadd.f32 %v349, %v500
      %v502 = vpop.f32.mrf.mxu0
      %503 = vmatprep.mubr.f32.mxu0 0.0
      %504 = vmatmul.mubr.f32.gmra.mxu0 %v384
      %v505 = vpop.f32.mrf.mxu0
      %v506 = vadd.f32 %v350, %v505
      %v507 = vpop.f32.mrf.mxu0
      %508 = vmatprep.mubr.f32.mxu0 0.0
      %509 = vmatmul.mubr.f32.gmra.mxu0 %v387
      %v510 = vpop.f32.mrf.mxu0
      %v511 = vadd.f32 %v351, %v510
      %v512 = vpop.f32.mrf.mxu0
      %513 = vdwg.mxu0
      %v514 = vld [vmem:[%s3] sm:$0xff]
      %v515 = vld [vmem:[%s3 + $0x8] sm:$0xff]
      %v516 = vld [vmem:[%s3 + $0x10] sm:$0xff]
      %v517 = vld [vmem:[%s3 + $0x18] sm:$0xff]
      %v518 = vld [vmem:[%s3 + $0x20] sm:$0xff]
      %v519 = vld [vmem:[%s3 + $0x28] sm:$0xff]
      %v520 = vld [vmem:[%s3 + $0x30] sm:$0xff]
      %v521 = vld [vmem:[%s3 + $0x38] sm:$0xff]
      %v523 = vsel %vm352, %v514, 0
      %v526 = vsel %vm352, %v515, 0
      %v529 = vsel %vm352, %v516, 0
      %v532 = vsel %vm352, %v517, 0
      %v535 = vsel %vm352, %v518, 0
      %v538 = vsel %vm352, %v519, 0
      %v541 = vsel %vm352, %v520, 0
      %v544 = vsel %vm352, %v521, 0
      %546 = vmatprep.subr.mxu0 0.0
      %547 = vmatpush1.msra.mxu0 0.0
      %548 = vmatprep.subr.mxu0 0.0
      %549 = vmatpush1.msra.mxu0 0.0
      %550 = vmatprep.subr.mxu0 0.0
      %551 = vmatpush1.msra.mxu0 0.0
      %552 = vmatprep.subr.mxu0 0.0
      %553 = vmatpush1.msra.mxu0 0.0
      %554 = vmatprep.subr.mxu0 0.0
      %555 = vmatpush1.msra.mxu0 0.0
      %556 = vmatprep.subr.mxu0 0.0
      %557 = vmatpush1.msra.mxu0 0.0
      %558 = vmatprep.subr.mxu0 0.0
      %559 = vmatpush1.msra.mxu0 0.0
      %560 = vmatprep.subr.mxu0 0.0
      %561 = vmatpush1.msra.mxu0 0.0
      %562 = vmatprep.subr.mxu0 0.0
      %563 = vmatpush1.msra.mxu0 0.0
      %564 = vmatprep.subr.mxu0 0.0
      %565 = vmatpush1.msra.mxu0 0.0
      %566 = vmatprep.subr.mxu0 0.0
      %567 = vmatpush1.msra.mxu0 0.0
      %568 = vmatprep.subr.mxu0 0.0
      %569 = vmatpush1.msra.mxu0 0.0
      %570 = vmatprep.subr.mxu0 0.0
      %571 = vmatpush1.msra.mxu0 %v327
      %572 = vmatprep.subr.mxu0 0.0
      %573 = vmatpush1.msra.mxu0 %v326
      %574 = vmatprep.subr.mxu0 0.0
      %575 = vmatpush1.msra.mxu0 %v325
      %576 = vmatprep.subr.mxu0 0.0
      %577 = vmatpush1.msra.mxu0 %v324
      %578 = vmatprep.subr.mxu0 0.0
      %579 = vmatpush2.msra.mxu0 0.0
      %580 = vmatprep.subr.mxu0 0.0
      %581 = vmatpush2.msra.mxu0 0.0
      %582 = vmatprep.subr.mxu0 0.0
      %583 = vmatpush2.msra.mxu0 0.0
      %584 = vmatprep.subr.mxu0 0.0
      %585 = vmatpush2.msra.mxu0 0.0
      %586 = vmatprep.subr.mxu0 0.0
      %587 = vmatpush2.msra.mxu0 0.0
      %588 = vmatprep.subr.mxu0 0.0
      %589 = vmatpush2.msra.mxu0 0.0
      %590 = vmatprep.subr.mxu0 0.0
      %591 = vmatpush2.msra.mxu0 0.0
      %592 = vmatprep.subr.mxu0 0.0
      %593 = vmatpush2.msra.mxu0 0.0
      %594 = vmatprep.subr.mxu0 0.0
      %595 = vmatpush2.msra.mxu0 0.0
      %596 = vmatprep.subr.mxu0 0.0
      %597 = vmatpush2.msra.mxu0 0.0
      %598 = vmatprep.subr.mxu0 0.0
      %599 = vmatpush2.msra.mxu0 0.0
      %600 = vmatprep.subr.mxu0 0.0
      %601 = vmatpush2.msra.mxu0 0.0
      %602 = vmatprep.subr.mxu0 0.0
      %603 = vmatpush2.msra.mxu0 0.0
      %604 = vmatprep.subr.mxu0 0.0
      %605 = vmatpush2.msra.mxu0 0.0
      %606 = vmatprep.subr.mxu0 0.0
      %607 = vmatpush2.msra.mxu0 0.0
      %608 = vmatprep.subr.mxu0 0.0
      %609 = vmatpush2.msra.mxu0 0.0
      %610 = vmatprep.mubr.f32.mxu0 0.0
      %611 = vmatmul.mubr.f32.gmra.mxu0 %v523
      %v612 = vpop.f32.mrf.mxu0
      %v613 = vadd.f32 0.0, %v612
      %v614 = vpop.f32.mrf.mxu0
      %615 = vmatprep.mubr.f32.mxu0 0.0
      %616 = vmatmul.mubr.f32.gmra.mxu0 %v526
      %v617 = vpop.f32.mrf.mxu0
      %v618 = vadd.f32 0.0, %v617
      %v619 = vpop.f32.mrf.mxu0
      %620 = vmatprep.mubr.f32.mxu0 0.0
      %621 = vmatmul.mubr.f32.gmra.mxu0 %v529
      %v622 = vpop.f32.mrf.mxu0
      %v623 = vadd.f32 0.0, %v622
      %v624 = vpop.f32.mrf.mxu0
      %625 = vmatprep.mubr.f32.mxu0 0.0
      %626 = vmatmul.mubr.f32.gmra.mxu0 %v532
      %v627 = vpop.f32.mrf.mxu0
      %v628 = vadd.f32 0.0, %v627
      %v629 = vpop.f32.mrf.mxu0
      %630 = vmatprep.mubr.f32.mxu0 0.0
      %631 = vmatmul.mubr.f32.gmra.mxu0 %v535
      %v632 = vpop.f32.mrf.mxu0
      %v633 = vadd.f32 0.0, %v632
      %v634 = vpop.f32.mrf.mxu0
      %635 = vmatprep.mubr.f32.mxu0 0.0
      %636 = vmatmul.mubr.f32.gmra.mxu0 %v538
      %v637 = vpop.f32.mrf.mxu0
      %v638 = vadd.f32 0.0, %v637
      %v639 = vpop.f32.mrf.mxu0
      %640 = vmatprep.mubr.f32.mxu0 0.0
      %641 = vmatmul.mubr.f32.gmra.mxu0 %v541
      %v642 = vpop.f32.mrf.mxu0
      %v643 = vadd.f32 0.0, %v642
      %v644 = vpop.f32.mrf.mxu0
      %645 = vmatprep.mubr.f32.mxu0 0.0
      %646 = vmatmul.mubr.f32.gmra.mxu0 %v544
      %v647 = vpop.f32.mrf.mxu0
      %v648 = vadd.f32 0.0, %v647
      %v649 = vpop.f32.mrf.mxu0
      %650 = vdwg.mxu0
      %v651 = vadd.f32 %v456, %v613
      %v652 = vadd.f32 %v461, %v618
      %v653 = vadd.f32 %v466, %v623
      %v654 = vadd.f32 %v471, %v628
      %v655 = vxor.u32 %v651, 2147483648
      %v656 = vxor.u32 %v652, 2147483648
      %v657 = vxor.u32 %v653, 2147483648
      %v658 = vxor.u32 %v654, 2147483648
      %v659 = vmul.f32 %v655, 1.442695
      %v660 = vpow.pop %v659
      %v661 = vmul.f32 %v656, 1.442695
      %v662 = vpow.pop %v661
      %v663 = vmul.f32 %v657, 1.442695
      %v664 = vpow.pop %v663
      %v665 = vmul.f32 %v658, 1.442695
      %v666 = vpow.pop %v665
      %v667 = vadd.f32 %v660, 1.0
      %v668 = vadd.f32 %v662, 1.0
      %v669 = vadd.f32 %v664, 1.0
      %v670 = vadd.f32 %v666, 1.0
      %v671 = vrcp.pop %v667
      %v672 = vmul.f32 1.0, %v671
      %v673 = vrcp.pop %v668
      %v674 = vmul.f32 1.0, %v673
      %v675 = vrcp.pop %v669
      %v676 = vmul.f32 1.0, %v675
      %v677 = vrcp.pop %v670
      %v678 = vmul.f32 1.0, %v677
      %v679 = vadd.f32 %v476, %v633
      %v680 = vadd.f32 %v481, %v638
      %v681 = vadd.f32 %v486, %v643
      %v682 = vadd.f32 %v491, %v648
      %v683 = vxor.u32 %v679, 2147483648
      %v684 = vxor.u32 %v680, 2147483648
      %v685 = vxor.u32 %v681, 2147483648
      %v686 = vxor.u32 %v682, 2147483648
      %v687 = vmul.f32 %v683, 1.442695
      %v688 = vpow.pop %v687
      %v689 = vmul.f32 %v684, 1.442695
      %v690 = vpow.pop %v689
      %v691 = vmul.f32 %v685, 1.442695
      %v692 = vpow.pop %v691
      %v693 = vmul.f32 %v686, 1.442695
      %v694 = vpow.pop %v693
      %v695 = vadd.f32 %v688, 1.0
      %v696 = vadd.f32 %v690, 1.0
      %v697 = vadd.f32 %v692, 1.0
      %v698 = vadd.f32 %v694, 1.0
      %v699 = vrcp.pop %v695
      %v700 = vmul.f32 1.0, %v699
      %v701 = vrcp.pop %v696
      %v702 = vmul.f32 1.0, %v701
      %v703 = vrcp.pop %v697
      %v704 = vmul.f32 1.0, %v703
      %v705 = vrcp.pop %v698
      %v706 = vmul.f32 1.0, %v705
      %v707 = vmul.f32 %v700, %v324
      %v708 = vmul.f32 %v702, %v325
      %v709 = vmul.f32 %v704, %v326
      %v710 = vmul.f32 %v706, %v327
      %v711 = vld [vmem:[%s4] sm:$0xff]
      %v712 = vld [vmem:[%s4 + $0x8] sm:$0xff]
      %v713 = vld [vmem:[%s4 + $0x10] sm:$0xff]
      %v714 = vld [vmem:[%s4 + $0x18] sm:$0xff]
      %v716 = vsel %vm352, %v711, 0
      %v719 = vsel %vm352, %v712, 0
      %v722 = vsel %vm352, %v713, 0
      %v725 = vsel %vm352, %v714, 0
      %727 = vmatprep.subr.mxu0 0.0
      %728 = vmatpush1.msra.mxu0 0.0
      %729 = vmatprep.subr.mxu0 0.0
      %730 = vmatpush1.msra.mxu0 0.0
      %731 = vmatprep.subr.mxu0 0.0
      %732 = vmatpush1.msra.mxu0 0.0
      %733 = vmatprep.subr.mxu0 0.0
      %734 = vmatpush1.msra.mxu0 0.0
      %735 = vmatprep.subr.mxu0 0.0
      %736 = vmatpush1.msra.mxu0 0.0
      %737 = vmatprep.subr.mxu0 0.0
      %738 = vmatpush1.msra.mxu0 0.0
      %739 = vmatprep.subr.mxu0 0.0
      %740 = vmatpush1.msra.mxu0 0.0
      %741 = vmatprep.subr.mxu0 0.0
      %742 = vmatpush1.msra.mxu0 0.0
      %743 = vmatprep.subr.mxu0 0.0
      %744 = vmatpush1.msra.mxu0 0.0
      %745 = vmatprep.subr.mxu0 0.0
      %746 = vmatpush1.msra.mxu0 0.0
      %747 = vmatprep.subr.mxu0 0.0
      %748 = vmatpush1.msra.mxu0 0.0
      %749 = vmatprep.subr.mxu0 0.0
      %750 = vmatpush1.msra.mxu0 0.0
      %751 = vmatprep.subr.mxu0 0.0
      %752 = vmatpush1.msra.mxu0 %v710
      %753 = vmatprep.subr.mxu0 0.0
      %754 = vmatpush1.msra.mxu0 %v709
      %755 = vmatprep.subr.mxu0 0.0
      %756 = vmatpush1.msra.mxu0 %v708
      %757 = vmatprep.subr.mxu0 0.0
      %758 = vmatpush1.msra.mxu0 %v707
      %759 = vmatprep.subr.mxu0 0.0
      %760 = vmatpush2.msra.mxu0 0.0
      %761 = vmatprep.subr.mxu0 0.0
      %762 = vmatpush2.msra.mxu0 0.0
      %763 = vmatprep.subr.mxu0 0.0
      %764 = vmatpush2.msra.mxu0 0.0
      %765 = vmatprep.subr.mxu0 0.0
      %766 = vmatpush2.msra.mxu0 0.0
      %767 = vmatprep.subr.mxu0 0.0
      %768 = vmatpush2.msra.mxu0 0.0
      %769 = vmatprep.subr.mxu0 0.0
      %770 = vmatpush2.msra.mxu0 0.0
      %771 = vmatprep.subr.mxu0 0.0
      %772 = vmatpush2.msra.mxu0 0.0
      %773 = vmatprep.subr.mxu0 0.0
      %774 = vmatpush2.msra.mxu0 0.0
      %775 = vmatprep.subr.mxu0 0.0
      %776 = vmatpush2.msra.mxu0 0.0
      %777 = vmatprep.subr.mxu0 0.0
      %778 = vmatpush2.msra.mxu0 0.0
      %779 = vmatprep.subr.mxu0 0.0
      %780 = vmatpush2.msra.mxu0 0.0
      %781 = vmatprep.subr.mxu0 0.0
      %782 = vmatpush2.msra.mxu0 0.0
      %783 = vmatprep.subr.mxu0 0.0
      %784 = vmatpush2.msra.mxu0 0.0
      %785 = vmatprep.subr.mxu0 0.0
      %786 = vmatpush2.msra.mxu0 0.0
      %787 = vmatprep.subr.mxu0 0.0
      %788 = vmatpush2.msra.mxu0 0.0
      %789 = vmatprep.subr.mxu0 0.0
      %790 = vmatpush2.msra.mxu0 0.0
      %791 = vmatprep.mubr.f32.mxu0 0.0
      %792 = vmatmul.mubr.f32.gmra.mxu0 %v716
      %v793 = vpop.f32.mrf.mxu0
      %v794 = vadd.f32 0.0, %v793
      %v795 = vpop.f32.mrf.mxu0
      %796 = vmatprep.mubr.f32.mxu0 0.0
      %797 = vmatmul.mubr.f32.gmra.mxu0 %v719
      %v798 = vpop.f32.mrf.mxu0
      %v799 = vadd.f32 0.0, %v798
      %v800 = vpop.f32.mrf.mxu0
      %801 = vmatprep.mubr.f32.mxu0 0.0
      %802 = vmatmul.mubr.f32.gmra.mxu0 %v722
      %v803 = vpop.f32.mrf.mxu0
      %v804 = vadd.f32 0.0, %v803
      %v805 = vpop.f32.mrf.mxu0
      %806 = vmatprep.mubr.f32.mxu0 0.0
      %807 = vmatmul.mubr.f32.gmra.mxu0 %v725
      %v808 = vpop.f32.mrf.mxu0
      %v809 = vadd.f32 0.0, %v808
      %v810 = vpop.f32.mrf.mxu0
      %811 = vdwg.mxu0
      %v812 = vadd.f32 %v496, %v794
      %v813 = vadd.f32 %v501, %v799
      %v814 = vadd.f32 %v506, %v804
      %v815 = vadd.f32 %v511, %v809
      %v816 = vtanh.pop %v812
      %v817 = vtanh.pop %v813
      %v818 = vtanh.pop %v814
      %v819 = vtanh.pop %v815
      %v820 = vsub.f32 1.0, %v672
      %v821 = vsub.f32 1.0, %v674
      %v822 = vsub.f32 1.0, %v676
      %v823 = vsub.f32 1.0, %v678
      %v824 = vmul.f32 %v820, %v324
      %v825 = vmul.f32 %v821, %v325
      %v826 = vmul.f32 %v822, %v326
      %v827 = vmul.f32 %v823, %v327
      %v828 = vmul.f32 %v672, %v816
      %v829 = vmul.f32 %v674, %v817
      %v830 = vmul.f32 %v676, %v818
      %v831 = vmul.f32 %v678, %v819
      %v832 = vadd.f32 %v824, %v828
      %v833 = vadd.f32 %v825, %v829
      %v834 = vadd.f32 %v826, %v830
      %v835 = vadd.f32 %v827, %v831
      %836 = vst.msk [vmem:[#allocation2] sm:$0xff] %vm352, %v832
      %837 = vst.msk [vmem:[#allocation2 + $0x8] sm:$0xff] %vm352, %v833
      %838 = vst.msk [vmem:[#allocation2 + $0x10] sm:$0xff] %vm352, %v834
      %839 = vst.msk [vmem:[#allocation2 + $0x18] sm:$0xff] %vm352, %v835
      %v840 = vld [vmem:[%s6] sm:$0xf]
      %v841 = vld [vmem:[%s6 + $0x4] sm:$0xf]
      %v842 = vld [vmem:[%s6 + $0x8] sm:$0xf]
      %v843 = vld [vmem:[%s6 + $0xc] sm:$0xf]
      %v844 = vld [vmem:[%s6 + $0x10] sm:$0xf]
      %v845 = vld [vmem:[%s6 + $0x14] sm:$0xf]
      %v846 = vld [vmem:[%s6 + $0x18] sm:$0xf]
      %v847 = vld [vmem:[%s6 + $0x1c] sm:$0xf]
      %v848 = vld [vmem:[%s6 + $0x20] sm:$0xf]
      %v849 = vld [vmem:[%s6 + $0x24] sm:$0xf]
      %v850 = vld [vmem:[%s6 + $0x28] sm:$0xf]
      %v851 = vld [vmem:[%s6 + $0x2c] sm:$0xf]
      %v852 = vld [vmem:[%s6 + $0x30] sm:$0xf]
      %v853 = vld [vmem:[%s6 + $0x34] sm:$0xf]
      %v854 = vld [vmem:[%s6 + $0x38] sm:$0xf]
      %v855 = vld [vmem:[%s6 + $0x3c] sm:$0xf]
      %v856 = vld [vmem:[%s6 + $0x40] sm:$0xf]
      %v857 = vld [vmem:[%s6 + $0x44] sm:$0xf]
      %v858 = vld [vmem:[%s6 + $0x48] sm:$0xf]
      %v859 = vld [vmem:[%s6 + $0x4c] sm:$0xf]
      %v860 = vld [vmem:[%s6 + $0x50] sm:$0xf]
      %v861 = vld [vmem:[%s6 + $0x54] sm:$0xf]
      %v862 = vld [vmem:[%s6 + $0x58] sm:$0xf]
      %v863 = vld [vmem:[%s6 + $0x5c] sm:$0xf]
      %v864 = vld [vmem:[%s6 + $0x60] sm:$0xf]
      %v865 = vld [vmem:[%s6 + $0x64] sm:$0xf]
      %v866 = vld [vmem:[%s6 + $0x68] sm:$0xf]
      %v867 = vld [vmem:[%s6 + $0x6c] sm:$0xf]
      %v868 = vld [vmem:[%s6 + $0x70] sm:$0xf]
      %v869 = vld [vmem:[%s6 + $0x74] sm:$0xf]
      %v870 = vld [vmem:[%s6 + $0x78] sm:$0xf]
      %v871 = vld [vmem:[%s6 + $0x7c] sm:$0xf]
      %v872 = vpack.c.bf16 %v833, %v832
      %v873 = vpack.c.bf16 %v835, %v834
      %v906 = vunpack.c.l.b16 %v840
      %v907 = vunpack.c.l.b16 %v841
      %v908 = vunpack.c.l.b16 %v842
      %v909 = vunpack.c.l.b16 %v843
      %v910 = vunpack.c.l.b16 %v844
      %v911 = vunpack.c.l.b16 %v845
      %v912 = vunpack.c.l.b16 %v846
      %v913 = vunpack.c.l.b16 %v847
      %v914 = vunpack.c.l.b16 %v848
      %v915 = vunpack.c.l.b16 %v849
      %v916 = vunpack.c.l.b16 %v850
      %v917 = vunpack.c.l.b16 %v851
      %v918 = vunpack.c.l.b16 %v852
      %v919 = vunpack.c.l.b16 %v853
      %v920 = vunpack.c.l.b16 %v854
      %v921 = vunpack.c.l.b16 %v855
      %v922 = vunpack.c.l.b16 %v856
      %v923 = vunpack.c.l.b16 %v857
      %v924 = vunpack.c.l.b16 %v858
      %v925 = vunpack.c.l.b16 %v859
      %v926 = vunpack.c.l.b16 %v860
      %v927 = vunpack.c.l.b16 %v861
      %v928 = vunpack.c.l.b16 %v862
      %v929 = vunpack.c.l.b16 %v863
      %v930 = vunpack.c.l.b16 %v864
      %v931 = vunpack.c.l.b16 %v865
      %v932 = vunpack.c.l.b16 %v866
      %v933 = vunpack.c.l.b16 %v867
      %v934 = vunpack.c.l.b16 %v868
      %v935 = vunpack.c.l.b16 %v869
      %v936 = vunpack.c.l.b16 %v870
      %v937 = vunpack.c.l.b16 %v871
      %v938 = vpack.c.b16 %v907, %v906
      %v939 = vpack.c.b16 %v909, %v908
      %v940 = vpack.c.b16 %v911, %v910
      %v941 = vpack.c.b16 %v913, %v912
      %v942 = vpack.c.b16 %v915, %v914
      %v943 = vpack.c.b16 %v917, %v916
      %v944 = vpack.c.b16 %v919, %v918
      %v945 = vpack.c.b16 %v921, %v920
      %v946 = vpack.c.b16 %v923, %v922
      %v947 = vpack.c.b16 %v925, %v924
      %v948 = vpack.c.b16 %v927, %v926
      %v949 = vpack.c.b16 %v929, %v928
      %v950 = vpack.c.b16 %v931, %v930
      %v951 = vpack.c.b16 %v933, %v932
      %v952 = vpack.c.b16 %v935, %v934
      %v953 = vpack.c.b16 %v937, %v936
      %v955 = vsel %vm352, %v938, 0
      %v958 = vsel %vm352, %v939, 0
      %v961 = vsel %vm352, %v940, 0
      %v964 = vsel %vm352, %v941, 0
      %v967 = vsel %vm352, %v942, 0
      %v970 = vsel %vm352, %v943, 0
      %v973 = vsel %vm352, %v944, 0
      %v976 = vsel %vm352, %v945, 0
      %v979 = vsel %vm352, %v946, 0
      %v982 = vsel %vm352, %v947, 0
      %v985 = vsel %vm352, %v948, 0
      %v988 = vsel %vm352, %v949, 0
      %v991 = vsel %vm352, %v950, 0
      %v994 = vsel %vm352, %v951, 0
      %v997 = vsel %vm352, %v952, 0
      %v1000 = vsel %vm352, %v953, 0
      %1002 = vmatprep.subr.bf16.mxu0 0
      %1003 = vmatpush1.bf16.msra.mxu0 0
      %1004 = vmatprep.subr.bf16.mxu0 0
      %1005 = vmatpush1.bf16.msra.mxu0 0
      %1006 = vmatprep.subr.bf16.mxu0 0
      %1007 = vmatpush1.bf16.msra.mxu0 0
      %1008 = vmatprep.subr.bf16.mxu0 0
      %1009 = vmatpush1.bf16.msra.mxu0 0
      %1010 = vmatprep.subr.bf16.mxu0 0
      %1011 = vmatpush1.bf16.msra.mxu0 0
      %1012 = vmatprep.subr.bf16.mxu0 0
      %1013 = vmatpush1.bf16.msra.mxu0 0
      %1014 = vmatprep.subr.bf16.mxu0 0
      %1015 = vmatpush1.bf16.msra.mxu0 %v873
      %1016 = vmatprep.subr.bf16.mxu0 0
      %1017 = vmatpush1.bf16.msra.mxu0 %v872
      %1018 = vmatprep.subr.bf16.mxu0 0
      %1019 = vmatpush2.bf16.msra.mxu0 0
      %1020 = vmatprep.subr.bf16.mxu0 0
      %1021 = vmatpush2.bf16.msra.mxu0 0
      %1022 = vmatprep.subr.bf16.mxu0 0
      %1023 = vmatpush2.bf16.msra.mxu0 0
      %1024 = vmatprep.subr.bf16.mxu0 0
      %1025 = vmatpush2.bf16.msra.mxu0 0
      %1026 = vmatprep.subr.bf16.mxu0 0
      %1027 = vmatpush2.bf16.msra.mxu0 0
      %1028 = vmatprep.subr.bf16.mxu0 0
      %1029 = vmatpush2.bf16.msra.mxu0 0
      %1030 = vmatprep.subr.bf16.mxu0 0
      %1031 = vmatpush2.bf16.msra.mxu0 0
      %1032 = vmatprep.subr.bf16.mxu0 0
      %1033 = vmatpush2.bf16.msra.mxu0 0
      %1034 = vmatprep.mubr.bf16.mxu0 0
      %1035 = vmatmul.mubr.bf16.gmra.mxu0 %v955
      %v1036 = vpop.f32.mrf.mxu0
      %v1037 = vadd.f32 0.0, %v1036
      %v1038 = vpop.f32.mrf.mxu0
      %v1039 = vpop.f32.mrf.mxu0
      %v1040 = vadd.f32 0.0, %v1039
      %v1041 = vpop.f32.mrf.mxu0
      %1042 = vmatprep.mubr.bf16.mxu0 0
      %1043 = vmatmul.mubr.bf16.gmra.mxu0 %v958
      %v1044 = vpop.f32.mrf.mxu0
      %v1045 = vadd.f32 0.0, %v1044
      %v1046 = vpop.f32.mrf.mxu0
      %v1047 = vpop.f32.mrf.mxu0
      %v1048 = vadd.f32 0.0, %v1047
      %v1049 = vpop.f32.mrf.mxu0
      %1050 = vmatprep.mubr.bf16.mxu0 0
      %1051 = vmatmul.mubr.bf16.gmra.mxu0 %v961
      %v1052 = vpop.f32.mrf.mxu0
      %v1053 = vadd.f32 0.0, %v1052
      %v1054 = vpop.f32.mrf.mxu0
      %v1055 = vpop.f32.mrf.mxu0
      %v1056 = vadd.f32 0.0, %v1055
      %v1057 = vpop.f32.mrf.mxu0
      %1058 = vmatprep.mubr.bf16.mxu0 0
      %1059 = vmatmul.mubr.bf16.gmra.mxu0 %v964
      %v1060 = vpop.f32.mrf.mxu0
      %v1061 = vadd.f32 0.0, %v1060
      %v1062 = vpop.f32.mrf.mxu0
      %v1063 = vpop.f32.mrf.mxu0
      %v1064 = vadd.f32 0.0, %v1063
      %v1065 = vpop.f32.mrf.mxu0
      %1066 = vmatprep.mubr.bf16.mxu0 0
      %1067 = vmatmul.mubr.bf16.gmra.mxu0 %v967
      %v1068 = vpop.f32.mrf.mxu0
      %v1069 = vadd.f32 0.0, %v1068
      %v1070 = vpop.f32.mrf.mxu0
      %v1071 = vpop.f32.mrf.mxu0
      %v1072 = vadd.f32 0.0, %v1071
      %v1073 = vpop.f32.mrf.mxu0
      %1074 = vmatprep.mubr.bf16.mxu0 0
      %1075 = vmatmul.mubr.bf16.gmra.mxu0 %v970
      %v1076 = vpop.f32.mrf.mxu0
      %v1077 = vadd.f32 0.0, %v1076
      %v1078 = vpop.f32.mrf.mxu0
      %v1079 = vpop.f32.mrf.mxu0
      %v1080 = vadd.f32 0.0, %v1079
      %v1081 = vpop.f32.mrf.mxu0
      %1082 = vmatprep.mubr.bf16.mxu0 0
      %1083 = vmatmul.mubr.bf16.gmra.mxu0 %v973
      %v1084 = vpop.f32.mrf.mxu0
      %v1085 = vadd.f32 0.0, %v1084
      %v1086 = vpop.f32.mrf.mxu0
      %v1087 = vpop.f32.mrf.mxu0
      %v1088 = vadd.f32 0.0, %v1087
      %v1089 = vpop.f32.mrf.mxu0
      %1090 = vmatprep.mubr.bf16.mxu0 0
      %1091 = vmatmul.mubr.bf16.gmra.mxu0 %v976
      %v1092 = vpop.f32.mrf.mxu0
      %v1093 = vadd.f32 0.0, %v1092
      %v1094 = vpop.f32.mrf.mxu0
      %v1095 = vpop.f32.mrf.mxu0
      %v1096 = vadd.f32 0.0, %v1095
      %v1097 = vpop.f32.mrf.mxu0
      %1098 = vmatprep.mubr.bf16.mxu0 0
      %1099 = vmatmul.mubr.bf16.gmra.mxu0 %v979
      %v1100 = vpop.f32.mrf.mxu0
      %v1101 = vadd.f32 0.0, %v1100
      %v1102 = vpop.f32.mrf.mxu0
      %v1103 = vpop.f32.mrf.mxu0
      %v1104 = vadd.f32 0.0, %v1103
      %v1105 = vpop.f32.mrf.mxu0
      %1106 = vmatprep.mubr.bf16.mxu0 0
      %1107 = vmatmul.mubr.bf16.gmra.mxu0 %v982
      %v1108 = vpop.f32.mrf.mxu0
      %v1109 = vadd.f32 0.0, %v1108
      %v1110 = vpop.f32.mrf.mxu0
      %v1111 = vpop.f32.mrf.mxu0
      %v1112 = vadd.f32 0.0, %v1111
      %v1113 = vpop.f32.mrf.mxu0
      %1114 = vmatprep.mubr.bf16.mxu0 0
      %1115 = vmatmul.mubr.bf16.gmra.mxu0 %v985
      %v1116 = vpop.f32.mrf.mxu0
      %v1117 = vadd.f32 0.0, %v1116
      %v1118 = vpop.f32.mrf.mxu0
      %v1119 = vpop.f32.mrf.mxu0
      %v1120 = vadd.f32 0.0, %v1119
      %v1121 = vpop.f32.mrf.mxu0
      %1122 = vmatprep.mubr.bf16.mxu0 0
      %1123 = vmatmul.mubr.bf16.gmra.mxu0 %v988
      %v1124 = vpop.f32.mrf.mxu0
      %v1125 = vadd.f32 0.0, %v1124
      %v1126 = vpop.f32.mrf.mxu0
      %v1127 = vpop.f32.mrf.mxu0
      %v1128 = vadd.f32 0.0, %v1127
      %v1129 = vpop.f32.mrf.mxu0
      %1130 = vmatprep.mubr.bf16.mxu0 0
      %1131 = vmatmul.mubr.bf16.gmra.mxu0 %v991
      %v1132 = vpop.f32.mrf.mxu0
      %v1133 = vadd.f32 0.0, %v1132
      %v1134 = vpop.f32.mrf.mxu0
      %v1135 = vpop.f32.mrf.mxu0
      %v1136 = vadd.f32 0.0, %v1135
      %v1137 = vpop.f32.mrf.mxu0
      %1138 = vmatprep.mubr.bf16.mxu0 0
      %1139 = vmatmul.mubr.bf16.gmra.mxu0 %v994
      %v1140 = vpop.f32.mrf.mxu0
      %v1141 = vadd.f32 0.0, %v1140
      %v1142 = vpop.f32.mrf.mxu0
      %v1143 = vpop.f32.mrf.mxu0
      %v1144 = vadd.f32 0.0, %v1143
      %v1145 = vpop.f32.mrf.mxu0
      %1146 = vmatprep.mubr.bf16.mxu0 0
      %1147 = vmatmul.mubr.bf16.gmra.mxu0 %v997
      %v1148 = vpop.f32.mrf.mxu0
      %v1149 = vadd.f32 0.0, %v1148
      %v1150 = vpop.f32.mrf.mxu0
      %v1151 = vpop.f32.mrf.mxu0
      %v1152 = vadd.f32 0.0, %v1151
      %v1153 = vpop.f32.mrf.mxu0
      %1154 = vmatprep.mubr.bf16.mxu0 0
      %1155 = vmatmul.mubr.bf16.gmra.mxu0 %v1000
      %v1156 = vpop.f32.mrf.mxu0
      %v1157 = vadd.f32 0.0, %v1156
      %v1158 = vpop.f32.mrf.mxu0
      %v1159 = vpop.f32.mrf.mxu0
      %v1160 = vadd.f32 0.0, %v1159
      %v1161 = vpop.f32.mrf.mxu0
      %1162 = vdwg.mxu0
      %v1163 = vld [vmem:[%s300] sm:$0xff]
      %v1164 = vld [vmem:[%s300 + $0x8] sm:$0xff]
      %v1165 = vld [vmem:[%s300 + $0x10] sm:$0xff]
      %v1166 = vld [vmem:[%s300 + $0x18] sm:$0xff]
      %v1167 = vld [vmem:[%s300 + $0x20] sm:$0xff]
      %v1168 = vld [vmem:[%s300 + $0x28] sm:$0xff]
      %v1169 = vld [vmem:[%s300 + $0x30] sm:$0xff]
      %v1170 = vld [vmem:[%s300 + $0x38] sm:$0xff]
      %v1171 = vld [vmem:[%s300 + $0x40] sm:$0xff]
      %v1172 = vld [vmem:[%s300 + $0x48] sm:$0xff]
      %v1173 = vld [vmem:[%s300 + $0x50] sm:$0xff]
      %v1174 = vld [vmem:[%s300 + $0x58] sm:$0xff]
      %v1175 = vld [vmem:[%s300 + $0x60] sm:$0xff]
      %v1176 = vld [vmem:[%s300 + $0x68] sm:$0xff]
      %v1177 = vld [vmem:[%s300 + $0x70] sm:$0xff]
      %v1178 = vld [vmem:[%s300 + $0x78] sm:$0xff]
      %v1179 = vld [vmem:[%s300 + $0x80] sm:$0xff]
      %v1180 = vld [vmem:[%s300 + $0x88] sm:$0xff]
      %v1181 = vld [vmem:[%s300 + $0x90] sm:$0xff]
      %v1182 = vld [vmem:[%s300 + $0x98] sm:$0xff]
      %v1183 = vld [vmem:[%s300 + $0xa0] sm:$0xff]
      %v1184 = vld [vmem:[%s300 + $0xa8] sm:$0xff]
      %v1185 = vld [vmem:[%s300 + $0xb0] sm:$0xff]
      %v1186 = vld [vmem:[%s300 + $0xb8] sm:$0xff]
      %v1187 = vld [vmem:[%s300 + $0xc0] sm:$0xff]
      %v1188 = vld [vmem:[%s300 + $0xc8] sm:$0xff]
      %v1189 = vld [vmem:[%s300 + $0xd0] sm:$0xff]
      %v1190 = vld [vmem:[%s300 + $0xd8] sm:$0xff]
      %v1191 = vld [vmem:[%s300 + $0xe0] sm:$0xff]
      %v1192 = vld [vmem:[%s300 + $0xe8] sm:$0xff]
      %v1193 = vld [vmem:[%s300 + $0xf0] sm:$0xff]
      %v1194 = vld [vmem:[%s300 + $0xf8] sm:$0xff]
      %v1195 = vpack.c.bf16 %v1040, %v1037
      %v1196 = vpack.c.bf16 %v1048, %v1045
      %v1197 = vpack.c.bf16 %v1056, %v1053
      %v1198 = vpack.c.bf16 %v1064, %v1061
      %v1199 = vpack.c.bf16 %v1072, %v1069
      %v1200 = vpack.c.bf16 %v1080, %v1077
      %v1201 = vpack.c.bf16 %v1088, %v1085
      %v1202 = vpack.c.bf16 %v1096, %v1093
      %v1203 = vpack.c.bf16 %v1104, %v1101
      %v1204 = vpack.c.bf16 %v1112, %v1109
      %v1205 = vpack.c.bf16 %v1120, %v1117
      %v1206 = vpack.c.bf16 %v1128, %v1125
      %v1207 = vpack.c.bf16 %v1136, %v1133
      %v1208 = vpack.c.bf16 %v1144, %v1141
      %v1209 = vpack.c.bf16 %v1152, %v1149
      %v1210 = vpack.c.bf16 %v1160, %v1157
      %v1243 = vunpack.c.l.b16 %v1163
      %v1244 = vunpack.c.h.b16 %v1163
      %v1245 = vunpack.c.l.b16 %v1164
      %v1246 = vunpack.c.h.b16 %v1164
      %v1247 = vunpack.c.l.b16 %v1165
      %v1248 = vunpack.c.h.b16 %v1165
      %v1249 = vunpack.c.l.b16 %v1166
      %v1250 = vunpack.c.h.b16 %v1166
      %v1251 = vunpack.c.l.b16 %v1167
      %v1252 = vunpack.c.h.b16 %v1167
      %v1253 = vunpack.c.l.b16 %v1168
      %v1254 = vunpack.c.h.b16 %v1168
      %v1255 = vunpack.c.l.b16 %v1169
      %v1256 = vunpack.c.h.b16 %v1169
      %v1257 = vunpack.c.l.b16 %v1170
      %v1258 = vunpack.c.h.b16 %v1170
      %v1259 = vunpack.c.l.b16 %v1171
      %v1260 = vunpack.c.h.b16 %v1171
      %v1261 = vunpack.c.l.b16 %v1172
      %v1262 = vunpack.c.h.b16 %v1172
      %v1263 = vunpack.c.l.b16 %v1173
      %v1264 = vunpack.c.h.b16 %v1173
      %v1265 = vunpack.c.l.b16 %v1174
      %v1266 = vunpack.c.h.b16 %v1174
      %v1267 = vunpack.c.l.b16 %v1175
      %v1268 = vunpack.c.h.b16 %v1175
      %v1269 = vunpack.c.l.b16 %v1176
      %v1270 = vunpack.c.h.b16 %v1176
      %v1271 = vunpack.c.l.b16 %v1177
      %v1272 = vunpack.c.h.b16 %v1177
      %v1273 = vunpack.c.l.b16 %v1178
      %v1274 = vunpack.c.h.b16 %v1178
      %v1275 = vunpack.c.l.b16 %v1179
      %v1276 = vunpack.c.h.b16 %v1179
      %v1277 = vunpack.c.l.b16 %v1180
      %v1278 = vunpack.c.h.b16 %v1180
      %v1279 = vunpack.c.l.b16 %v1181
      %v1280 = vunpack.c.h.b16 %v1181
      %v1281 = vunpack.c.l.b16 %v1182
      %v1282 = vunpack.c.h.b16 %v1182
      %v1283 = vunpack.c.l.b16 %v1183
      %v1284 = vunpack.c.h.b16 %v1183
      %v1285 = vunpack.c.l.b16 %v1184
      %v1286 = vunpack.c.h.b16 %v1184
      %v1287 = vunpack.c.l.b16 %v1185
      %v1288 = vunpack.c.h.b16 %v1185
      %v1289 = vunpack.c.l.b16 %v1186
      %v1290 = vunpack.c.h.b16 %v1186
      %v1291 = vunpack.c.l.b16 %v1187
      %v1292 = vunpack.c.h.b16 %v1187
      %v1293 = vunpack.c.l.b16 %v1188
      %v1294 = vunpack.c.h.b16 %v1188
      %v1295 = vunpack.c.l.b16 %v1189
      %v1296 = vunpack.c.h.b16 %v1189
      %v1297 = vunpack.c.l.b16 %v1190
      %v1298 = vunpack.c.h.b16 %v1190
      %v1299 = vunpack.c.l.b16 %v1191
      %v1300 = vunpack.c.h.b16 %v1191
      %v1301 = vunpack.c.l.b16 %v1192
      %v1302 = vunpack.c.h.b16 %v1192
      %v1303 = vunpack.c.l.b16 %v1193
      %v1304 = vunpack.c.h.b16 %v1193
      %v1305 = vunpack.c.l.b16 %v1194
      %v1306 = vunpack.c.h.b16 %v1194
      %v1307 = vpack.c.b16 %v1245, %v1243
      %v1308 = vpack.c.b16 %v1246, %v1244
      %v1309 = vpack.c.b16 %v1249, %v1247
      %v1310 = vpack.c.b16 %v1250, %v1248
      %v1311 = vpack.c.b16 %v1253, %v1251
      %v1312 = vpack.c.b16 %v1254, %v1252
      %v1313 = vpack.c.b16 %v1257, %v1255
      %v1314 = vpack.c.b16 %v1258, %v1256
      %v1315 = vpack.c.b16 %v1261, %v1259
      %v1316 = vpack.c.b16 %v1262, %v1260
      %v1317 = vpack.c.b16 %v1265, %v1263
      %v1318 = vpack.c.b16 %v1266, %v1264
      %v1319 = vpack.c.b16 %v1269, %v1267
      %v1320 = vpack.c.b16 %v1270, %v1268
      %v1321 = vpack.c.b16 %v1273, %v1271
      %v1322 = vpack.c.b16 %v1274, %v1272
      %v1323 = vpack.c.b16 %v1277, %v1275
      %v1324 = vpack.c.b16 %v1278, %v1276
      %v1325 = vpack.c.b16 %v1281, %v1279
      %v1326 = vpack.c.b16 %v1282, %v1280
      %v1327 = vpack.c.b16 %v1285, %v1283
      %v1328 = vpack.c.b16 %v1286, %v1284
      %v1329 = vpack.c.b16 %v1289, %v1287
      %v1330 = vpack.c.b16 %v1290, %v1288
      %v1331 = vpack.c.b16 %v1293, %v1291
      %v1332 = vpack.c.b16 %v1294, %v1292
      %v1333 = vpack.c.b16 %v1297, %v1295
      %v1334 = vpack.c.b16 %v1298, %v1296
      %v1335 = vpack.c.b16 %v1301, %v1299
      %v1336 = vpack.c.b16 %v1302, %v1300
      %v1337 = vpack.c.b16 %v1305, %v1303
      %v1338 = vpack.c.b16 %v1306, %v1304
      %1371 = vmatprep.subr.bf16.mxu0 0
      %1372 = vmatpush1.bf16.msra.mxu0 %v1202
      %1373 = vmatprep.subr.bf16.mxu0 0
      %1374 = vmatpush1.bf16.msra.mxu0 %v1201
      %1375 = vmatprep.subr.bf16.mxu0 0
      %1376 = vmatpush1.bf16.msra.mxu0 %v1200
      %1377 = vmatprep.subr.bf16.mxu0 0
      %1378 = vmatpush1.bf16.msra.mxu0 %v1199
      %1379 = vmatprep.subr.bf16.mxu0 0
      %1380 = vmatpush1.bf16.msra.mxu0 %v1198
      %1381 = vmatprep.subr.bf16.mxu0 0
      %1382 = vmatpush1.bf16.msra.mxu0 %v1197
      %1383 = vmatprep.subr.bf16.mxu0 0
      %1384 = vmatpush1.bf16.msra.mxu0 %v1196
      %1385 = vmatprep.subr.bf16.mxu0 0
      %1386 = vmatpush1.bf16.msra.mxu0 %v1195
      %1387 = vmatprep.subr.bf16.mxu0 0
      %1388 = vmatpush2.bf16.msra.mxu0 %v1210
      %1389 = vmatprep.subr.bf16.mxu0 0
      %1390 = vmatpush2.bf16.msra.mxu0 %v1209
      %1391 = vmatprep.subr.bf16.mxu0 0
      %1392 = vmatpush2.bf16.msra.mxu0 %v1208
      %1393 = vmatprep.subr.bf16.mxu0 0
      %1394 = vmatpush2.bf16.msra.mxu0 %v1207
      %1395 = vmatprep.subr.bf16.mxu0 0
      %1396 = vmatpush2.bf16.msra.mxu0 %v1206
      %1397 = vmatprep.subr.bf16.mxu0 0
      %1398 = vmatpush2.bf16.msra.mxu0 %v1205
      %1399 = vmatprep.subr.bf16.mxu0 0
      %1400 = vmatpush2.bf16.msra.mxu0 %v1204
      %1401 = vmatprep.subr.bf16.mxu0 0
      %1402 = vmatpush2.bf16.msra.mxu0 %v1203
      %1403 = vmatprep.mubr.bf16.mxu0 %v1308
      %1404 = vmatmul.mubr.bf16.gmra.mxu0 %v1307
      %v1405 = vpop.f32.mrf.mxu0
      %v1406 = vadd.f32 0.0, %v1405
      %v1407 = vpop.f32.mrf.mxu0
      %v1408 = vpop.f32.mrf.mxu0
      %v1409 = vadd.f32 0.0, %v1408
      %v1410 = vpop.f32.mrf.mxu0
      %1411 = vmatprep.mubr.bf16.mxu0 %v1310
      %1412 = vmatmul.mubr.bf16.gmra.mxu0 %v1309
      %v1413 = vpop.f32.mrf.mxu0
      %v1414 = vadd.f32 0.0, %v1413
      %v1415 = vpop.f32.mrf.mxu0
      %v1416 = vpop.f32.mrf.mxu0
      %v1417 = vadd.f32 0.0, %v1416
      %v1418 = vpop.f32.mrf.mxu0
      %1419 = vmatprep.mubr.bf16.mxu0 %v1312
      %1420 = vmatmul.mubr.bf16.gmra.mxu0 %v1311
      %v1421 = vpop.f32.mrf.mxu0
      %v1422 = vadd.f32 0.0, %v1421
      %v1423 = vpop.f32.mrf.mxu0
      %v1424 = vpop.f32.mrf.mxu0
      %v1425 = vadd.f32 0.0, %v1424
      %v1426 = vpop.f32.mrf.mxu0
      %1427 = vmatprep.mubr.bf16.mxu0 %v1314
      %1428 = vmatmul.mubr.bf16.gmra.mxu0 %v1313
      %v1429 = vpop.f32.mrf.mxu0
      %v1430 = vadd.f32 0.0, %v1429
      %v1431 = vpop.f32.mrf.mxu0
      %v1432 = vpop.f32.mrf.mxu0
      %v1433 = vadd.f32 0.0, %v1432
      %v1434 = vpop.f32.mrf.mxu0
      %1435 = vmatprep.mubr.bf16.mxu0 %v1316
      %1436 = vmatmul.mubr.bf16.gmra.mxu0 %v1315
      %v1437 = vpop.f32.mrf.mxu0
      %v1438 = vadd.f32 0.0, %v1437
      %v1439 = vpop.f32.mrf.mxu0
      %v1440 = vpop.f32.mrf.mxu0
      %v1441 = vadd.f32 0.0, %v1440
      %v1442 = vpop.f32.mrf.mxu0
      %1443 = vmatprep.mubr.bf16.mxu0 %v1318
      %1444 = vmatmul.mubr.bf16.gmra.mxu0 %v1317
      %v1445 = vpop.f32.mrf.mxu0
      %v1446 = vadd.f32 0.0, %v1445
      %v1447 = vpop.f32.mrf.mxu0
      %v1448 = vpop.f32.mrf.mxu0
      %v1449 = vadd.f32 0.0, %v1448
      %v1450 = vpop.f32.mrf.mxu0
      %1451 = vmatprep.mubr.bf16.mxu0 %v1320
      %1452 = vmatmul.mubr.bf16.gmra.mxu0 %v1319
      %v1453 = vpop.f32.mrf.mxu0
      %v1454 = vadd.f32 0.0, %v1453
      %v1455 = vpop.f32.mrf.mxu0
      %v1456 = vpop.f32.mrf.mxu0
      %v1457 = vadd.f32 0.0, %v1456
      %v1458 = vpop.f32.mrf.mxu0
      %1459 = vmatprep.mubr.bf16.mxu0 %v1322
      %1460 = vmatmul.mubr.bf16.gmra.mxu0 %v1321
      %v1461 = vpop.f32.mrf.mxu0
      %v1462 = vadd.f32 0.0, %v1461
      %v1463 = vpop.f32.mrf.mxu0
      %v1464 = vpop.f32.mrf.mxu0
      %v1465 = vadd.f32 0.0, %v1464
      %v1466 = vpop.f32.mrf.mxu0
      %1467 = vmatprep.mubr.bf16.mxu0 %v1324
      %1468 = vmatmul.mubr.bf16.gmra.mxu0 %v1323
      %v1469 = vpop.f32.mrf.mxu0
      %v1470 = vadd.f32 0.0, %v1469
      %v1471 = vpop.f32.mrf.mxu0
      %v1472 = vpop.f32.mrf.mxu0
      %v1473 = vadd.f32 0.0, %v1472
      %v1474 = vpop.f32.mrf.mxu0
      %1475 = vmatprep.mubr.bf16.mxu0 %v1326
      %1476 = vmatmul.mubr.bf16.gmra.mxu0 %v1325
      %v1477 = vpop.f32.mrf.mxu0
      %v1478 = vadd.f32 0.0, %v1477
      %v1479 = vpop.f32.mrf.mxu0
      %v1480 = vpop.f32.mrf.mxu0
      %v1481 = vadd.f32 0.0, %v1480
      %v1482 = vpop.f32.mrf.mxu0
      %1483 = vmatprep.mubr.bf16.mxu0 %v1328
      %1484 = vmatmul.mubr.bf16.gmra.mxu0 %v1327
      %v1485 = vpop.f32.mrf.mxu0
      %v1486 = vadd.f32 0.0, %v1485
      %v1487 = vpop.f32.mrf.mxu0
      %v1488 = vpop.f32.mrf.mxu0
      %v1489 = vadd.f32 0.0, %v1488
      %v1490 = vpop.f32.mrf.mxu0
      %1491 = vmatprep.mubr.bf16.mxu0 %v1330
      %1492 = vmatmul.mubr.bf16.gmra.mxu0 %v1329
      %v1493 = vpop.f32.mrf.mxu0
      %v1494 = vadd.f32 0.0, %v1493
      %v1495 = vpop.f32.mrf.mxu0
      %v1496 = vpop.f32.mrf.mxu0
      %v1497 = vadd.f32 0.0, %v1496
      %v1498 = vpop.f32.mrf.mxu0
      %1499 = vmatprep.mubr.bf16.mxu0 %v1332
      %1500 = vmatmul.mubr.bf16.gmra.mxu0 %v1331
      %v1501 = vpop.f32.mrf.mxu0
      %v1502 = vadd.f32 0.0, %v1501
      %v1503 = vpop.f32.mrf.mxu0
      %v1504 = vpop.f32.mrf.mxu0
      %v1505 = vadd.f32 0.0, %v1504
      %v1506 = vpop.f32.mrf.mxu0
      %1507 = vmatprep.mubr.bf16.mxu0 %v1334
      %1508 = vmatmul.mubr.bf16.gmra.mxu0 %v1333
      %v1509 = vpop.f32.mrf.mxu0
      %v1510 = vadd.f32 0.0, %v1509
      %v1511 = vpop.f32.mrf.mxu0
      %v1512 = vpop.f32.mrf.mxu0
      %v1513 = vadd.f32 0.0, %v1512
      %v1514 = vpop.f32.mrf.mxu0
      %1515 = vmatprep.mubr.bf16.mxu0 %v1336
      %1516 = vmatmul.mubr.bf16.gmra.mxu0 %v1335
      %v1517 = vpop.f32.mrf.mxu0
      %v1518 = vadd.f32 0.0, %v1517
      %v1519 = vpop.f32.mrf.mxu0
      %v1520 = vpop.f32.mrf.mxu0
      %v1521 = vadd.f32 0.0, %v1520
      %v1522 = vpop.f32.mrf.mxu0
      %1523 = vmatprep.mubr.bf16.mxu0 %v1338
      %1524 = vmatmul.mubr.bf16.gmra.mxu0 %v1337
      %v1525 = vpop.f32.mrf.mxu0
      %v1526 = vadd.f32 0.0, %v1525
      %v1527 = vpop.f32.mrf.mxu0
      %v1528 = vpop.f32.mrf.mxu0
      %v1529 = vadd.f32 0.0, %v1528
      %v1530 = vpop.f32.mrf.mxu0
      %1531 = vdwg.mxu0
      %vm1532 = vcmp.ge.f32.partialorder %v1406, 0.0
      %vm1533 = vcmp.ge.f32.partialorder %v1409, 0.0
      %vm1534 = vcmp.ge.f32.partialorder %v1414, 0.0
      %vm1535 = vcmp.ge.f32.partialorder %v1417, 0.0
      %vm1536 = vcmp.ge.f32.partialorder %v1422, 0.0
      %vm1537 = vcmp.ge.f32.partialorder %v1425, 0.0
      %vm1538 = vcmp.ge.f32.partialorder %v1430, 0.0
      %vm1539 = vcmp.ge.f32.partialorder %v1433, 0.0
      %vm1540 = vcmp.ge.f32.partialorder %v1438, 0.0
      %vm1541 = vcmp.ge.f32.partialorder %v1441, 0.0
      %vm1542 = vcmp.ge.f32.partialorder %v1446, 0.0
      %vm1543 = vcmp.ge.f32.partialorder %v1449, 0.0
      %vm1544 = vcmp.ge.f32.partialorder %v1454, 0.0
      %vm1545 = vcmp.ge.f32.partialorder %v1457, 0.0
      %vm1546 = vcmp.ge.f32.partialorder %v1462, 0.0
      %vm1547 = vcmp.ge.f32.partialorder %v1465, 0.0
      %vm1548 = vcmp.ge.f32.partialorder %v1470, 0.0
      %vm1549 = vcmp.ge.f32.partialorder %v1473, 0.0
      %vm1550 = vcmp.ge.f32.partialorder %v1478, 0.0
      %vm1551 = vcmp.ge.f32.partialorder %v1481, 0.0
      %vm1552 = vcmp.ge.f32.partialorder %v1486, 0.0
      %vm1553 = vcmp.ge.f32.partialorder %v1489, 0.0
      %vm1554 = vcmp.ge.f32.partialorder %v1494, 0.0
      %vm1555 = vcmp.ge.f32.partialorder %v1497, 0.0
      %vm1556 = vcmp.ge.f32.partialorder %v1502, 0.0
      %vm1557 = vcmp.ge.f32.partialorder %v1505, 0.0
      %vm1558 = vcmp.ge.f32.partialorder %v1510, 0.0
      %vm1559 = vcmp.ge.f32.partialorder %v1513, 0.0
      %vm1560 = vcmp.ge.f32.partialorder %v1518, 0.0
      %vm1561 = vcmp.ge.f32.partialorder %v1521, 0.0
      %vm1562 = vcmp.ge.f32.partialorder %v1526, 0.0
      %vm1563 = vcmp.ge.f32.partialorder %v1529, 0.0
      %v1564 = vmul.f32 %v1406, 0.22916667
      %v1565 = vmul.f32 %v1409, 0.22916667
      %v1566 = vmul.f32 %v1414, 0.22916667
      %v1567 = vmul.f32 %v1417, 0.22916667
      %v1568 = vmul.f32 %v1422, 0.22916667
      %v1569 = vmul.f32 %v1425, 0.22916667
      %v1570 = vmul.f32 %v1430, 0.22916667
      %v1571 = vmul.f32 %v1433, 0.22916667
      %v1572 = vmul.f32 %v1438, 0.22916667
      %v1573 = vmul.f32 %v1441, 0.22916667
      %v1574 = vmul.f32 %v1446, 0.22916667
      %v1575 = vmul.f32 %v1449, 0.22916667
      %v1576 = vmul.f32 %v1454, 0.22916667
      %v1577 = vmul.f32 %v1457, 0.22916667
      %v1578 = vmul.f32 %v1462, 0.22916667
      %v1579 = vmul.f32 %v1465, 0.22916667
      %v1580 = vmul.f32 %v1470, 0.22916667
      %v1581 = vmul.f32 %v1473, 0.22916667
      %v1582 = vmul.f32 %v1478, 0.22916667
      %v1583 = vmul.f32 %v1481, 0.22916667
      %v1584 = vmul.f32 %v1486, 0.22916667
      %v1585 = vmul.f32 %v1489, 0.22916667
      %v1586 = vmul.f32 %v1494, 0.22916667
      %v1587 = vmul.f32 %v1497, 0.22916667
      %v1588 = vmul.f32 %v1502, 0.22916667
      %v1589 = vmul.f32 %v1505, 0.22916667
      %v1590 = vmul.f32 %v1510, 0.22916667
      %v1591 = vmul.f32 %v1513, 0.22916667
      %v1592 = vmul.f32 %v1518, 0.22916667
      %v1593 = vmul.f32 %v1521, 0.22916667
      %v1594 = vmul.f32 %v1526, 0.22916667
      %v1595 = vmul.f32 %v1529, 0.22916667
      %v1596 = vsel %vm1532, %v1406, %v1564
      %v1597 = vsel %vm1533, %v1409, %v1565
      %v1598 = vsel %vm1534, %v1414, %v1566
      %v1599 = vsel %vm1535, %v1417, %v1567
      %v1600 = vsel %vm1536, %v1422, %v1568
      %v1601 = vsel %vm1537, %v1425, %v1569
      %v1602 = vsel %vm1538, %v1430, %v1570
      %v1603 = vsel %vm1539, %v1433, %v1571
      %v1604 = vsel %vm1540, %v1438, %v1572
      %v1605 = vsel %vm1541, %v1441, %v1573
      %v1606 = vsel %vm1542, %v1446, %v1574
      %v1607 = vsel %vm1543, %v1449, %v1575
      %v1608 = vsel %vm1544, %v1454, %v1576
      %v1609 = vsel %vm1545, %v1457, %v1577
      %v1610 = vsel %vm1546, %v1462, %v1578
      %v1611 = vsel %vm1547, %v1465, %v1579
      %v1612 = vsel %vm1548, %v1470, %v1580
      %v1613 = vsel %vm1549, %v1473, %v1581
      %v1614 = vsel %vm1550, %v1478, %v1582
      %v1615 = vsel %vm1551, %v1481, %v1583
      %v1616 = vsel %vm1552, %v1486, %v1584
      %v1617 = vsel %vm1553, %v1489, %v1585
      %v1618 = vsel %vm1554, %v1494, %v1586
      %v1619 = vsel %vm1555, %v1497, %v1587
      %v1620 = vsel %vm1556, %v1502, %v1588
      %v1621 = vsel %vm1557, %v1505, %v1589
      %v1622 = vsel %vm1558, %v1510, %v1590
      %v1623 = vsel %vm1559, %v1513, %v1591
      %v1624 = vsel %vm1560, %v1518, %v1592
      %v1625 = vsel %vm1561, %v1521, %v1593
      %v1626 = vsel %vm1562, %v1526, %v1594
      %v1627 = vsel %vm1563, %v1529, %v1595
      %1628 = vst.msk [vmem:[%s305] sm:$0xff] %vm352, %v1596
      %1629 = vst.msk [vmem:[%s305 + $0x8] sm:$0xff] %vm352, %v1597
      %1630 = vst.msk [vmem:[%s305 + $0x10] sm:$0xff] %vm352, %v1598
      %1631 = vst.msk [vmem:[%s305 + $0x18] sm:$0xff] %vm352, %v1599
      %1632 = vst.msk [vmem:[%s305 + $0x20] sm:$0xff] %vm352, %v1600
      %1633 = vst.msk [vmem:[%s305 + $0x28] sm:$0xff] %vm352, %v1601
      %1634 = vst.msk [vmem:[%s305 + $0x30] sm:$0xff] %vm352, %v1602
      %1635 = vst.msk [vmem:[%s305 + $0x38] sm:$0xff] %vm352, %v1603
      %1636 = vst.msk [vmem:[%s305 + $0x40] sm:$0xff] %vm352, %v1604
      %1637 = vst.msk [vmem:[%s305 + $0x48] sm:$0xff] %vm352, %v1605
      %1638 = vst.msk [vmem:[%s305 + $0x50] sm:$0xff] %vm352, %v1606
      %1639 = vst.msk [vmem:[%s305 + $0x58] sm:$0xff] %vm352, %v1607
      %1640 = vst.msk [vmem:[%s305 + $0x60] sm:$0xff] %vm352, %v1608
      %1641 = vst.msk [vmem:[%s305 + $0x68] sm:$0xff] %vm352, %v1609
      %1642 = vst.msk [vmem:[%s305 + $0x70] sm:$0xff] %vm352, %v1610
      %1643 = vst.msk [vmem:[%s305 + $0x78] sm:$0xff] %vm352, %v1611
      %1644 = vst.msk [vmem:[%s305 + $0x80] sm:$0xff] %vm352, %v1612
      %1645 = vst.msk [vmem:[%s305 + $0x88] sm:$0xff] %vm352, %v1613
      %1646 = vst.msk [vmem:[%s305 + $0x90] sm:$0xff] %vm352, %v1614
      %1647 = vst.msk [vmem:[%s305 + $0x98] sm:$0xff] %vm352, %v1615
      %1648 = vst.msk [vmem:[%s305 + $0xa0] sm:$0xff] %vm352, %v1616
      %1649 = vst.msk [vmem:[%s305 + $0xa8] sm:$0xff] %vm352, %v1617
      %1650 = vst.msk [vmem:[%s305 + $0xb0] sm:$0xff] %vm352, %v1618
      %1651 = vst.msk [vmem:[%s305 + $0xb8] sm:$0xff] %vm352, %v1619
      %1652 = vst.msk [vmem:[%s305 + $0xc0] sm:$0xff] %vm352, %v1620
      %1653 = vst.msk [vmem:[%s305 + $0xc8] sm:$0xff] %vm352, %v1621
      %1654 = vst.msk [vmem:[%s305 + $0xd0] sm:$0xff] %vm352, %v1622
      %1655 = vst.msk [vmem:[%s305 + $0xd8] sm:$0xff] %vm352, %v1623
      %1656 = vst.msk [vmem:[%s305 + $0xe0] sm:$0xff] %vm352, %v1624
      %1657 = vst.msk [vmem:[%s305 + $0xe8] sm:$0xff] %vm352, %v1625
      %1658 = vst.msk [vmem:[%s305 + $0xf0] sm:$0xff] %vm352, %v1626
      %1659 = vst.msk [vmem:[%s305 + $0xf8] sm:$0xff] %vm352, %v1627
      %p1660 = scmp.lt.s32.totalorder %s19, 3
      %s1661 = scalar_select %p1660, %s19, 3
      %s1662 = smul.addr %s1661, 32
      %s1663 = smul.addr %s1662, 8
      %s1664 = scalar_lea.vmem %s8, %s1663
      // Predicated region
      $region57: #{evolve_gcn_h_forward.3} parent=51 // pred_check
        %p1665 = pneg %p210
      $region58: #{evolve_gcn_h_forward.3} parent=51 // pred_check_branch
        %1667 = sbr.rel (%p1665) target = $region60
      $region59: #{evolve_gcn_h_forward.3} parent=51 // pred_region
        _
      $region60: #{evolve_gcn_h_forward.3} parent=51 // pred_fallthru
        _
    $region52: #{evolve_gcn_h_forward.3} parent=5 // pred_fallthru
      _
    %p1668 = scmp.le.s32.totalorder 2, %s14
    // Predicated region
    $region61: #{evolve_gcn_h_forward.3} parent=5 // pred_check
      %p1669 = pneg %p1668
    $region62: #{evolve_gcn_h_forward.3} parent=5 // pred_check_branch
      %1671 = sbr.rel (%p1669) target = $region64
    $region63: #{evolve_gcn_h_forward.3} parent=5 // pred_region
      %s1672 = ssub.s32 %s14, 2
      // Predicated region
      $region65: #{evolve_gcn_h_forward.3} parent=63 // pred_check
        %p1673 = pneg %p216
      $region66: #{evolve_gcn_h_forward.3} parent=63 // pred_check_branch
        %1675 = sbr.rel (%p1673) target = $region68
      $region67: #{evolve_gcn_h_forward.3} parent=63 // pred_region
        %p1676 = scmp.lt.s32.totalorder %s20, 3
        %s1677 = scalar_select %p1676, %s20, 3
        %s1678 = smul.addr %s1677, 32
        %s1679 = smul.addr %s1678, 8
        %s1680 = scalar_lea.vmem %s8, %s1679
      $region68: #{evolve_gcn_h_forward.3} parent=63 // pred_fallthru
        _
    $region64: #{evolve_gcn_h_forward.3} parent=5 // pred_fallthru
      _
  $region6: #{evolve_gcn_h_forward.3} parent=0 // loop_footer
    %s18 = sadd.s32 1, %s14
  $region7: #{evolve_gcn_h_forward.3} parent=0 // loop_footer_branch
    %13 = sbr.rel target = $region3
  $region8: #{evolve_gcn_h_forward.3} parent=0 // loop_exit
    _

</llo_original>
